<compile_context>
chip_gen: v7x
topology: tpu7x:2x2x1
jax: 0.10.0
libtpu: 0.0.40
codegen_flags: <defaults>
</compile_context>

<pallas_src>
import functools
import math

import numpy as np

import jax
import jax.numpy as jnp
from jax.experimental import pallas as pl
from jax.experimental.pallas import tpu as pltpu


# ----------------------------------------------------------------------------
# Trace-time constants
# ----------------------------------------------------------------------------
def _conv_masks(H, W):
    """(9, 1, H*W) validity masks for each 3x3 tap (zero padding at the image border)."""
    HW = H * W
    masks = np.zeros((9, 1, HW), np.float32)
    for dy in range(3):
        for dx in range(3):
            m = np.zeros((H, W), np.float32)
            hs = slice(max(0, 1 - dy), min(H, H + 1 - dy))
            ws = slice(max(0, 1 - dx), min(W, W + 1 - dx))
            m[hs, ws] = 1.0
            masks[dy * 3 + dx, 0, :] = m.reshape(-1)
    return masks


def _group_matrix(C, groups, HW):
    """(C, C): gmat @ per_channel_sum -> each channel gets its own group's mean."""
    Cg = C // groups
    m = np.zeros((C, C), np.float32)
    inv = 1.0 / float(Cg * HW)
    for g in range(groups):
        m[g * Cg:(g + 1) * Cg, g * Cg:(g + 1) * Cg] = inv
    return m


def _conv3x3_flat_weight(w):
    """(Cout, Cin, 3, 3) -> (Cout, 9*Cin) bf16; column block k = dy*3+dx matches tap order."""
    Cout, Cin = w.shape[0], w.shape[1]
    w9 = jnp.transpose(w, (2, 3, 0, 1)).reshape(9, Cout, Cin)
    return jnp.transpose(w9, (1, 0, 2)).reshape(Cout, 9 * Cin).astype(jnp.bfloat16)


# ----------------------------------------------------------------------------
# In-kernel helpers (traced inline)
# ----------------------------------------------------------------------------
def _group_norm(x, gmat, w, b, *, eps, swish):
    """x: (C, HW) f32. One-pass sum / sum-of-squares group statistics (stats stay f32)."""
    s1 = jnp.sum(x, axis=1, keepdims=True)            # (C, 1)
    s2 = jnp.sum(x * x, axis=1, keepdims=True)        # (C, 1)
    mean = jnp.dot(gmat, s1, preferred_element_type=jnp.float32,
                   precision=jax.lax.Precision.HIGHEST)           # (C, 1) group mean
    ex2 = jnp.dot(gmat, s2, preferred_element_type=jnp.float32,
                  precision=jax.lax.Precision.HIGHEST)            # (C, 1) group E[x^2]
    var = ex2 - mean * mean
    y = (x - mean) * jax.lax.rsqrt(var + eps)
    y = y * w + b
    if swish:
        # y * sigmoid(y): exp + reciprocal both live on the EUP slot
        y = y * pl.reciprocal(1.0 + jnp.exp(-y), approx=True)
    return y


def _conv3x3_mxu(h, w_flat, mask_ref, *, W):
    """3x3 'same' conv as ONE matmul: 9 shifted+masked taps stacked on sublanes (K=9*Cin)."""
    HW = h.shape[-1]
    taps = []
    for dy in range(3):
        for dx in range(3):
            k = dy * 3 + dx
            off = (dy - 1) * W + (dx - 1)
            t = h if off == 0 else pltpu.roll(h, shift=(-off) % HW, axis=1)
            taps.append((t * mask_ref[k]).astype(jnp.bfloat16))
    stacked = jnp.concatenate(taps, axis=0)                         # (9*Cin, HW) bf16
    return jnp.dot(w_flat, stacked, preferred_element_type=jnp.float32)   # (Cout, HW) f32


# ----------------------------------------------------------------------------
# Fused ResNet block kernel:  GN + Swish + Conv3x3 (+ FWA epilogue) (+ residual)
# ----------------------------------------------------------------------------
def _fused_block_kernel(x_ref, gmat_ref, gnw_ref, gnb_ref, w_ref, b_ref, m_ref,
                        *rest, W, eps, fwa_mode, res_mode, Cout):
    # rest = [fwa_s]? + [residual | (res_x, res_w, res_b)]? + [out]
    idx = 0
    if fwa_mode:
        s_ref = rest[idx]; idx += 1
    if res_mode == 1:
        r_ref = rest[idx]; idx += 1
    elif res_mode == 2:
        xr_ref, rw_ref, rb_ref = rest[idx:idx + 3]; idx += 3
    o_ref = rest[idx]

    x = x_ref[0].astype(jnp.float32)                                # (Cin, HW)
    h = _group_norm(x, gmat_ref[...], gnw_ref[...], gnb_ref[...], eps=eps, swish=True)
    y = _conv3x3_mxu(h, w_ref[...], m_ref, W=W) + b_ref[...]        # (Cout, HW) f32

    if fwa_mode == 2:                         # FeatureWiseAffine, affine level
        s = s_ref[0]                          # (2*Cout, 1)
        y = (1.0 + s[:Cout, :]) * y + s[Cout:, :]
    elif fwa_mode == 1:                       # FeatureWiseAffine, additive
        y = y + s_ref[0]                      # (Cout, 1) broadcast

    if res_mode == 1:                         # identity residual
        y = y + r_ref[0].astype(jnp.float32)
    elif res_mode == 2:                       # fused 1x1 res_conv residual
        res = jnp.dot(rw_ref[...], xr_ref[0].astype(jnp.bfloat16),
                      preferred_element_type=jnp.float32) + rb_ref[...]
        y = y + res

    o_ref[0] = y.astype(o_ref.dtype)


def fused_block(x, gn_w, gn_b, conv_w, conv_b, *, groups, eps=1e-5,
                fwa_s=None, use_affine_level=False,
                residual=None, res_x=None, res_w=None, res_b=None):
    """GroupNorm -> Swish -> Conv2d(3x3, pad=1), with optional FWA epilogue / residual add."""
    B, Cin, H, W = x.shape
    Cout = conv_w.shape[0]
    HW = H * W

    x3 = x.reshape(B, Cin, HW)
    gmat = jnp.asarray(_group_matrix(Cin, groups, HW))
    gnw = gn_w.reshape(Cin, 1).astype(jnp.float32)
    gnb = gn_b.reshape(Cin, 1).astype(jnp.float32)
    w_flat = _conv3x3_flat_weight(conv_w)                           # (Cout, 9*Cin) bf16
    b2 = conv_b.reshape(Cout, 1).astype(jnp.float32)
    masks = jnp.asarray(_conv_masks(H, W))

    args = [x3, gmat, gnw, gnb, w_flat, b2, masks]
    in_specs = [
        pl.BlockSpec((1, Cin, HW), lambda b: (b, 0, 0)),
        pl.BlockSpec((Cin, Cin), lambda b: (0, 0)),
        pl.BlockSpec((Cin, 1), lambda b: (0, 0)),
        pl.BlockSpec((Cin, 1), lambda b: (0, 0)),
        pl.BlockSpec((Cout, 9 * Cin), lambda b: (0, 0)),
        pl.BlockSpec((Cout, 1), lambda b: (0, 0)),
        pl.BlockSpec((9, 1, HW), lambda b: (0, 0, 0)),
    ]

    fwa_mode = 0
    if fwa_s is not None:
        fwa_mode = 2 if use_affine_level else 1
        Ctot = fwa_s.shape[1]
        args.append(fwa_s.astype(jnp.float32))                      # (B, Ctot, 1)
        in_specs.append(pl.BlockSpec((1, Ctot, 1), lambda b: (b, 0, 0)))

    res_mode = 0
    if residual is not None:
        res_mode = 1
        args.append(residual.reshape(B, Cout, HW))
        in_specs.append(pl.BlockSpec((1, Cout, HW), lambda b: (b, 0, 0)))
    elif res_w is not None:
        res_mode = 2
        Cr = res_x.shape[1]
        rb = jnp.zeros((Cout,), jnp.float32) if res_b is None else res_b.astype(jnp.float32)
        args += [res_x.reshape(B, Cr, HW),
                 res_w.reshape(Cout, Cr).astype(jnp.bfloat16),
                 rb.reshape(Cout, 1)]
        in_specs += [pl.BlockSpec((1, Cr, HW), lambda b: (b, 0, 0)),
                     pl.BlockSpec((Cout, Cr), lambda b: (0, 0)),
                     pl.BlockSpec((Cout, 1), lambda b: (0, 0))]

    kernel = functools.partial(_fused_block_kernel, W=W, eps=eps,
                               fwa_mode=fwa_mode, res_mode=res_mode, Cout=Cout)
    out = pl.pallas_call(
        kernel,
        out_shape=jax.ShapeDtypeStruct((B, Cout, HW), x.dtype),
        grid=(B,),
        in_specs=in_specs,
        out_specs=pl.BlockSpec((1, Cout, HW), lambda b: (b, 0, 0)),
        compiler_params=pltpu.CompilerParams(dimension_semantics=("parallel",)),
    )(*args)
    return out.reshape(B, Cout, H, W)


# ----------------------------------------------------------------------------
# Fused self-attention kernel:  GN + qkv 1x1 + softmax attention + out 1x1 + residual
# ----------------------------------------------------------------------------
def _attention_block_kernel(x_ref, gmat_ref, gnw_ref, gnb_ref, qkv_w_ref,
                            out_w_ref, out_b_ref, o_ref,
                            *, eps, n_head, head_dim, scale):
    x = x_ref[0].astype(jnp.float32)                               # (C, HW)
    norm = _group_norm(x, gmat_ref[...], gnw_ref[...], gnb_ref[...], eps=eps, swish=False)
    qkv = jnp.dot(qkv_w_ref[...], norm.astype(jnp.bfloat16),
                  preferred_element_type=jnp.float32)              # (3C, HW) f32

    outs = []
    for h in range(n_head):
        base = h * 3 * head_dim
        q = qkv[base:base + head_dim]                              # (D, HW)
        k = qkv[base + head_dim:base + 2 * head_dim]               # (D, HW)
        v = qkv[base + 2 * head_dim:base + 3 * head_dim]           # (D, HW)
        qT = jnp.transpose(q)                                      # (HW, D), in-kernel XLU
        logits = jnp.dot(qT.astype(jnp.bfloat16), k.astype(jnp.bfloat16),
                         preferred_element_type=jnp.float32) * scale   # (HW, HW) f32
        m = jnp.max(logits, axis=-1, keepdims=True)
        p = jnp.exp(logits - m)
        attn = p * pl.reciprocal(jnp.sum(p, axis=-1, keepdims=True), approx=True)
        # out[d, s] = sum_t v[d, t] * attn[s, t]
        out_h = jax.lax.dot_general(v.astype(jnp.bfloat16), attn.astype(jnp.bfloat16),
                                    (((1,), (1,)), ((), ())),
                                    preferred_element_type=jnp.float32)   # (D, HW)
        outs.append(out_h)
    attn_out = outs[0] if n_head == 1 else jnp.concatenate(outs, axis=0)  # (C, HW)

    y = jnp.dot(out_w_ref[...], attn_out.astype(jnp.bfloat16),
                preferred_element_type=jnp.float32)
    y = y + out_b_ref[...] + x                                      # out proj + residual
    o_ref[0] = y.astype(o_ref.dtype)


def self_attention(x, gn_w, gn_b, qkv_w, out_w, out_b, *, norm_groups, n_head=1, eps=1e-5):
    B, C, H, W = x.shape
    HW = H * W
    head_dim = C // n_head
    x3 = x.reshape(B, C, HW)
    gmat = jnp.asarray(_group_matrix(C, norm_groups, HW))
    gnw = gn_w.reshape(C, 1).astype(jnp.float32)
    gnb = gn_b.reshape(C, 1).astype(jnp.float32)
    qkv2 = qkv_w.reshape(3 * C, C).astype(jnp.bfloat16)
    outw2 = out_w.reshape(C, C).astype(jnp.bfloat16)
    outb2 = out_b.reshape(C, 1).astype(jnp.float32)

    kernel = functools.partial(_attention_block_kernel, eps=eps, n_head=n_head,
                               head_dim=head_dim, scale=1.0 / math.sqrt(C))
    out = pl.pallas_call(
        kernel,
        out_shape=jax.ShapeDtypeStruct((B, C, HW), x.dtype),
        grid=(B,),
        in_specs=[
            pl.BlockSpec((1, C, HW), lambda b: (b, 0, 0)),
            pl.BlockSpec((C, C), lambda b: (0, 0)),
            pl.BlockSpec((C, 1), lambda b: (0, 0)),
            pl.BlockSpec((C, 1), lambda b: (0, 0)),
            pl.BlockSpec((3 * C, C), lambda b: (0, 0)),
            pl.BlockSpec((C, C), lambda b: (0, 0)),
            pl.BlockSpec((C, 1), lambda b: (0, 0)),
        ],
        out_specs=pl.BlockSpec((1, C, HW), lambda b: (b, 0, 0)),
        compiler_params=pltpu.CompilerParams(dimension_semantics=("parallel",)),
    )(x3, gmat, gnw, gnb, qkv2, outw2, outb2)
    return out.reshape(B, C, H, W)


# ----------------------------------------------------------------------------
# Full module forward
# ----------------------------------------------------------------------------
def resnet_bloc_with_attn(x, time_emb, p, *, norm_groups, with_attn,
                          use_affine_level=False, n_head=1):
    # FeatureWiseAffine Linear hoisted here (tiny (B, emb) @ (emb, Ctot)); consumed as the
    # fused epilogue of the first block kernel.
    s = time_emb.astype(jnp.float32) @ p['noise_w'].T.astype(jnp.float32) \
        + p['noise_b'].astype(jnp.float32)                          # (B, Ctot)
    s = s[:, :, None]                                               # channels -> sublanes

    # block1: GN + Swish + conv3x3, FWA epilogue
    h = fused_block(x, p['gn1_w'], p['gn1_b'], p['conv1_w'], p['conv1_b'],
                    groups=norm_groups, fwa_s=s, use_affine_level=use_affine_level)
    # block2: GN + Swish + conv3x3, residual (identity or fused 1x1 res_conv)
    if 'res_w' in p:
        h = fused_block(h, p['gn2_w'], p['gn2_b'], p['conv2_w'], p['conv2_b'],
                        groups=norm_groups, res_x=x, res_w=p['res_w'], res_b=p.get('res_b'))
    else:
        h = fused_block(h, p['gn2_w'], p['gn2_b'], p['conv2_w'], p['conv2_b'],
                        groups=norm_groups, residual=x)
    if with_attn:
        h = self_attention(h, p['attn_gn_w'], p['attn_gn_b'], p['attn_qkv_w'],
                           p['attn_out_w'], p['attn_out_b'],
                           norm_groups=norm_groups, n_head=n_head)
    return h


# ----------------------------------------------------------------------------
# Pure-JAX reference (mirrors the PyTorch forward)
# ----------------------------------------------------------------------------
def _ref_forward(x, time_emb, p, *, norm_groups, with_attn,
                 use_affine_level=False, n_head=1):
    HIGH = jax.lax.Precision.HIGHEST

    def gn(t, w, b):
        B, C, H, W = t.shape
        tg = t.reshape(B, norm_groups, C // norm_groups, H * W)
        mean = tg.mean(axis=(2, 3), keepdims=True)
        var = ((tg - mean) ** 2).mean(axis=(2, 3), keepdims=True)
        tn = ((tg - mean) / jnp.sqrt(var + 1e-5)).reshape(B, C, H, W)
        return tn * w.reshape(1, C, 1, 1) + b.reshape(1, C, 1, 1)

    def swish(t):
        return t * jax.nn.sigmoid(t)

    def conv(t, w, b, pad):
        out = jax.lax.conv_general_dilated(
            t, w, (1, 1), pad, dimension_numbers=('NCHW', 'OIHW', 'NCHW'),
            precision=HIGH)
        if b is not None:
            out = out + b.reshape(1, -1, 1, 1)
        return out

    B = x.shape[0]
    h = conv(swish(gn(x, p['gn1_w'], p['gn1_b'])), p['conv1_w'], p['conv1_b'], 'SAME')
    lin = (time_emb @ p['noise_w'].T + p['noise_b']).reshape(B, -1, 1, 1)
    if use_affine_level:
        gamma, beta = jnp.split(lin, 2, axis=1)
        h = (1.0 + gamma) * h + beta
    else:
        h = h + lin
    h = conv(swish(gn(h, p['gn2_w'], p['gn2_b'])), p['conv2_w'], p['conv2_b'], 'SAME')
    res = conv(x, p['res_w'], p['res_b'], 'VALID') if 'res_w' in p else x
    h = h + res
    if with_attn:
        B, C, H, W = h.shape
        head_dim = C // n_head
        norm = gn(h, p['attn_gn_w'], p['attn_gn_b'])
        qkv = conv(norm, p['attn_qkv_w'], None, 'VALID')
        qkv = qkv.reshape(B, n_head, head_dim * 3, H, W)
        q, k, v = jnp.split(qkv, 3, axis=2)
        attn = jnp.einsum('bnchw,bncyx->bnhwyx', q, k, precision=HIGH) / math.sqrt(C)
        attn = attn.reshape(B, n_head, H, W, -1)
        attn = jax.nn.softmax(attn, axis=-1)
        attn = attn.reshape(B, n_head, H, W, H, W)
        out = jnp.einsum('bnhwyx,bncyx->bnchw', attn, v, precision=HIGH)
        out = out.reshape(B, C, H, W)
        out = conv(out, p['attn_out_w'], p['attn_out_b'], 'VALID')
        h = out + h
    return h


if __name__ == "__main__":
    keys = jax.random.split(jax.random.PRNGKey(0), 24)

    def rnd(k, shape, scale=0.1):
        return scale * jax.random.normal(k, shape, dtype=jnp.float32)

    # ---- Case 1: dim == dim_out (identity residual), additive FWA, with attention ----
    B, C, H, W = 2, 32, 16, 16
    norm_groups, emb_dim = 8, 32
    x = jax.random.normal(keys[0], (B, C, H, W), dtype=jnp.float32)
    time_emb = jax.random.normal(keys[1], (B, emb_dim), dtype=jnp.float32)

    params = {
        'gn1_w': 1.0 + rnd(keys[2], (C,)),
        'gn1_b': rnd(keys[3], (C,)),
        'conv1_w': rnd(keys[4], (C, C, 3, 3)),
        'conv1_b': rnd(keys[5], (C,)),
        'noise_w': rnd(keys[6], (C, emb_dim)),
        'noise_b': rnd(keys[7], (C,)),
        'gn2_w': 1.0 + rnd(keys[8], (C,)),
        'gn2_b': rnd(keys[9], (C,)),
        'conv2_w': rnd(keys[10], (C, C, 3, 3)),
        'conv2_b': rnd(keys[11], (C,)),
        'attn_gn_w': 1.0 + rnd(keys[12], (C,)),
        'attn_gn_b': rnd(keys[13], (C,)),
        'attn_qkv_w': rnd(keys[14], (3 * C, C, 1, 1)),
        'attn_out_w': rnd(keys[15], (C, C, 1, 1)),
        'attn_out_b': rnd(keys[16], (C,)),
    }

    out = resnet_bloc_with_attn(x, time_emb, params,
                                norm_groups=norm_groups, with_attn=True)
    out = jax.block_until_ready(out)
    ref = _ref_forward(x, time_emb, params, norm_groups=norm_groups, with_attn=True)
    ref = jax.block_until_ready(ref)
    assert out.shape == ref.shape
    err1 = float(jnp.max(jnp.abs(out - ref)))
    assert jnp.allclose(out, ref, atol=4e-2, rtol=2e-2), f"case1 max abs err {err1}"

    # ---- Case 2: dim != dim_out (fused 1x1 res_conv), affine-level FWA, no attention ----
    dim, dim_out, emb2 = 16, 32, 24
    x2 = jax.random.normal(keys[17], (B, dim, H, W), dtype=jnp.float32)
    temb2 = jax.random.normal(keys[18], (B, emb2), dtype=jnp.float32)
    k2 = jax.random.split(keys[19], 16)
    params2 = {
        'gn1_w': 1.0 + rnd(k2[0], (dim,)),
        'gn1_b': rnd(k2[1], (dim,)),
        'conv1_w': rnd(k2[2], (dim_out, dim, 3, 3)),
        'conv1_b': rnd(k2[3], (dim_out,)),
        'noise_w': rnd(k2[4], (2 * dim_out, emb2)),
        'noise_b': rnd(k2[5], (2 * dim_out,)),
        'gn2_w': 1.0 + rnd(k2[6], (dim_out,)),
        'gn2_b': rnd(k2[7], (dim_out,)),
        'conv2_w': rnd(k2[8], (dim_out, dim_out, 3, 3)),
        'conv2_b': rnd(k2[9], (dim_out,)),
        'res_w': rnd(k2[10], (dim_out, dim, 1, 1)),
        'res_b': rnd(k2[11], (dim_out,)),
    }

    out2 = resnet_bloc_with_attn(x2, temb2, params2, norm_groups=norm_groups,
                                 with_attn=False, use_affine_level=True)
    out2 = jax.block_until_ready(out2)
    ref2 = _ref_forward(x2, temb2, params2, norm_groups=norm_groups,
                        with_attn=False, use_affine_level=True)
    ref2 = jax.block_until_ready(ref2)
    assert out2.shape == ref2.shape
    err2 = float(jnp.max(jnp.abs(out2 - ref2)))
    assert jnp.allclose(out2, ref2, atol=4e-2, rtol=2e-2), f"case2 max abs err {err2}"

    print("KERNEL_OK")
</pallas_src>

<mosaic_0001>
module attributes {stable_mosaic.version = 11 : i64} {
  func.func @_fused_block_kernel(%arg0: i32, %arg1: memref<1x32x256xf32, #tpu.memory_space<vmem>>, %arg2: memref<32x32xf32, #tpu.memory_space<vmem>>, %arg3: memref<32x1xf32, #tpu.memory_space<vmem>>, %arg4: memref<32x1xf32, #tpu.memory_space<vmem>>, %arg5: memref<32x288xbf16, #tpu.memory_space<vmem>>, %arg6: memref<32x1xf32, #tpu.memory_space<vmem>>, %arg7: memref<9x1x256xf32, #tpu.memory_space<vmem>>, %arg8: memref<1x32x1xf32, #tpu.memory_space<vmem>>, %arg9: memref<1x32x256xf32, #tpu.memory_space<vmem>>) attributes {dimension_semantics = [#tpu.dimension_semantics<parallel>], iteration_bounds = array<i64: 2>, scalar_prefetch = 0 : i64, scratch_operands = 0 : i64, tpu.core_type = #tpu.core_type<tc>, window_params = [{transform_indices = @transform_0, window_bounds = array<i64: 1, 32, 256>}, {pipeline_mode = #tpu.pipeline_mode<synchronous>, transform_indices = @transform_1, window_bounds = array<i64: 32, 32>}, {pipeline_mode = #tpu.pipeline_mode<synchronous>, transform_indices = @transform_2, window_bounds = array<i64: 32, 1>}, {pipeline_mode = #tpu.pipeline_mode<synchronous>, transform_indices = @transform_3, window_bounds = array<i64: 32, 1>}, {pipeline_mode = #tpu.pipeline_mode<synchronous>, transform_indices = @transform_4, window_bounds = array<i64: 32, 288>}, {pipeline_mode = #tpu.pipeline_mode<synchronous>, transform_indices = @transform_5, window_bounds = array<i64: 32, 1>}, {pipeline_mode = #tpu.pipeline_mode<synchronous>, transform_indices = @transform_6, window_bounds = array<i64: 9, 1, 256>}, {transform_indices = @transform_7, window_bounds = array<i64: 1, 32, 1>}, {transform_indices = @transform_8, window_bounds = array<i64: 1, 32, 256>}]} {
    %c0 = arith.constant 0 : index
    %c0_0 = arith.constant 0 : index
    %c0_1 = arith.constant 0 : index
    %0 = vector.load %arg1[%c0, %c0_0, %c0_1] : memref<1x32x256xf32, #tpu.memory_space<vmem>>, vector<1x32x256xf32>
    %1 = vector.shape_cast %0 : vector<1x32x256xf32> to vector<32x256xf32>
    %c0_2 = arith.constant 0 : index
    %c0_3 = arith.constant 0 : index
    %2 = vector.load %arg2[%c0_2, %c0_3] : memref<32x32xf32, #tpu.memory_space<vmem>>, vector<32x32xf32>
    %c0_4 = arith.constant 0 : index
    %c0_5 = arith.constant 0 : index
    %3 = vector.load %arg3[%c0_4, %c0_5] : memref<32x1xf32, #tpu.memory_space<vmem>>, vector<32x1xf32>
    %c0_6 = arith.constant 0 : index
    %c0_7 = arith.constant 0 : index
    %4 = vector.load %arg4[%c0_6, %c0_7] : memref<32x1xf32, #tpu.memory_space<vmem>>, vector<32x1xf32>
    %cst = arith.constant dense<0.000000e+00> : vector<32xf32>
    %5 = vector.multi_reduction <add>, %1, %cst [1] : vector<32x256xf32> to vector<32xf32>
    %6 = vector.shape_cast %5 : vector<32xf32> to vector<32x1xf32>
    %7 = arith.mulf %1, %1 : vector<32x256xf32>
    %cst_8 = arith.constant dense<0.000000e+00> : vector<32xf32>
    %8 = vector.multi_reduction <add>, %7, %cst_8 [1] : vector<32x256xf32> to vector<32xf32>
    %9 = vector.shape_cast %8 : vector<32xf32> to vector<32x1xf32>
    %cst_9 = arith.constant dense<0.000000e+00> : vector<32x1xf32>
    %10 = tpu.matmul %2, %6, %cst_9 {dimension_numbers = #tpu.dot_dimension_numbers<[1], [0], [0], [1], [0, 0, 1, 1], [], []>, precision = #tpu.contract_precision<fp32>} : vector<32x32xf32>, vector<32x1xf32>, vector<32x1xf32> -> vector<32x1xf32>
    %cst_10 = arith.constant dense<0.000000e+00> : vector<32x1xf32>
    %11 = tpu.matmul %2, %9, %cst_10 {dimension_numbers = #tpu.dot_dimension_numbers<[1], [0], [0], [1], [0, 0, 1, 1], [], []>, precision = #tpu.contract_precision<fp32>} : vector<32x32xf32>, vector<32x1xf32>, vector<32x1xf32> -> vector<32x1xf32>
    %12 = arith.mulf %10, %10 : vector<32x1xf32>
    %13 = arith.subf %11, %12 : vector<32x1xf32>
    %14 = vector.broadcast %10 : vector<32x1xf32> to vector<32x256xf32>
    %15 = arith.subf %1, %14 : vector<32x256xf32>
    %cst_11 = arith.constant 9.99999974E-6 : f32
    %16 = vector.broadcast %cst_11 : f32 to vector<32x1xf32>
    %17 = arith.addf %13, %16 : vector<32x1xf32>
    %18 = math.rsqrt %17 : vector<32x1xf32>
    %19 = vector.broadcast %18 : vector<32x1xf32> to vector<32x256xf32>
    %20 = arith.mulf %15, %19 : vector<32x256xf32>
    %21 = vector.broadcast %3 : vector<32x1xf32> to vector<32x256xf32>
    %22 = arith.mulf %20, %21 : vector<32x256xf32>
    %23 = vector.broadcast %4 : vector<32x1xf32> to vector<32x256xf32>
    %24 = arith.addf %22, %23 : vector<32x256xf32>
    %cst_12 = arith.constant 0.000000e+00 : f32
    %25 = vector.broadcast %cst_12 : f32 to vector<32x256xf32>
    %26 = arith.subf %25, %24 : vector<32x256xf32>
    %27 = math.exp %26 : vector<32x256xf32>
    %cst_13 = arith.constant 1.000000e+00 : f32
    %28 = vector.broadcast %cst_13 : f32 to vector<32x256xf32>
    %29 = arith.addf %28, %27 : vector<32x256xf32>
    %30 = tpu.reciprocal %29 {approx = true} : vector<32x256xf32> -> vector<32x256xf32>
    %31 = arith.mulf %24, %30 : vector<32x256xf32>
    %c0_14 = arith.constant 0 : index
    %c0_15 = arith.constant 0 : index
    %32 = vector.load %arg5[%c0_14, %c0_15] : memref<32x288xbf16, #tpu.memory_space<vmem>>, vector<32x288xbf16>
    %c17_i32 = arith.constant 17 : i32
    %33 = tpu.dynamic_rotate %31 by %c17_i32 dim 1 : vector<32x256xf32>, i32 -> vector<32x256xf32>
    %c0_16 = arith.constant 0 : index
    %c0_17 = arith.constant 0 : index
    %c0_18 = arith.constant 0 : index
    %34 = vector.load %arg7[%c0_16, %c0_17, %c0_18] : memref<9x1x256xf32, #tpu.memory_space<vmem>>, vector<1x1x256xf32>
    %35 = vector.shape_cast %34 : vector<1x1x256xf32> to vector<1x256xf32>
    %36 = vector.broadcast %35 : vector<1x256xf32> to vector<32x256xf32>
    %37 = arith.mulf %33, %36 : vector<32x256xf32>
    %38 = arith.truncf %37 : vector<32x256xf32> to vector<32x256xbf16>
    %c16_i32 = arith.constant 16 : i32
    %39 = tpu.dynamic_rotate %31 by %c16_i32 dim 1 : vector<32x256xf32>, i32 -> vector<32x256xf32>
    %c1 = arith.constant 1 : index
    %c0_19 = arith.constant 0 : index
    %c0_20 = arith.constant 0 : index
    %40 = vector.load %arg7[%c1, %c0_19, %c0_20] : memref<9x1x256xf32, #tpu.memory_space<vmem>>, vector<1x1x256xf32>
    %41 = vector.shape_cast %40 : vector<1x1x256xf32> to vector<1x256xf32>
    %42 = vector.broadcast %41 : vector<1x256xf32> to vector<32x256xf32>
    %43 = arith.mulf %39, %42 : vector<32x256xf32>
    %44 = arith.truncf %43 : vector<32x256xf32> to vector<32x256xbf16>
    %c15_i32 = arith.constant 15 : i32
    %45 = tpu.dynamic_rotate %31 by %c15_i32 dim 1 : vector<32x256xf32>, i32 -> vector<32x256xf32>
    %c2 = arith.constant 2 : index
    %c0_21 = arith.constant 0 : index
    %c0_22 = arith.constant 0 : index
    %46 = vector.load %arg7[%c2, %c0_21, %c0_22] : memref<9x1x256xf32, #tpu.memory_space<vmem>>, vector<1x1x256xf32>
    %47 = vector.shape_cast %46 : vector<1x1x256xf32> to vector<1x256xf32>
    %48 = vector.broadcast %47 : vector<1x256xf32> to vector<32x256xf32>
    %49 = arith.mulf %45, %48 : vector<32x256xf32>
    %50 = arith.truncf %49 : vector<32x256xf32> to vector<32x256xbf16>
    %c1_i32 = arith.constant 1 : i32
    %51 = tpu.dynamic_rotate %31 by %c1_i32 dim 1 : vector<32x256xf32>, i32 -> vector<32x256xf32>
    %c3 = arith.constant 3 : index
    %c0_23 = arith.constant 0 : index
    %c0_24 = arith.constant 0 : index
    %52 = vector.load %arg7[%c3, %c0_23, %c0_24] : memref<9x1x256xf32, #tpu.memory_space<vmem>>, vector<1x1x256xf32>
    %53 = vector.shape_cast %52 : vector<1x1x256xf32> to vector<1x256xf32>
    %54 = vector.broadcast %53 : vector<1x256xf32> to vector<32x256xf32>
    %55 = arith.mulf %51, %54 : vector<32x256xf32>
    %56 = arith.truncf %55 : vector<32x256xf32> to vector<32x256xbf16>
    %c4 = arith.constant 4 : index
    %c0_25 = arith.constant 0 : index
    %c0_26 = arith.constant 0 : index
    %57 = vector.load %arg7[%c4, %c0_25, %c0_26] : memref<9x1x256xf32, #tpu.memory_space<vmem>>, vector<1x1x256xf32>
    %58 = vector.shape_cast %57 : vector<1x1x256xf32> to vector<1x256xf32>
    %59 = vector.broadcast %58 : vector<1x256xf32> to vector<32x256xf32>
    %60 = arith.mulf %31, %59 : vector<32x256xf32>
    %61 = arith.truncf %60 : vector<32x256xf32> to vector<32x256xbf16>
    %c255_i32 = arith.constant 255 : i32
    %62 = tpu.dynamic_rotate %31 by %c255_i32 dim 1 : vector<32x256xf32>, i32 -> vector<32x256xf32>
    %c5 = arith.constant 5 : index
    %c0_27 = arith.constant 0 : index
    %c0_28 = arith.constant 0 : index
    %63 = vector.load %arg7[%c5, %c0_27, %c0_28] : memref<9x1x256xf32, #tpu.memory_space<vmem>>, vector<1x1x256xf32>
    %64 = vector.shape_cast %63 : vector<1x1x256xf32> to vector<1x256xf32>
    %65 = vector.broadcast %64 : vector<1x256xf32> to vector<32x256xf32>
    %66 = arith.mulf %62, %65 : vector<32x256xf32>
    %67 = arith.truncf %66 : vector<32x256xf32> to vector<32x256xbf16>
    %c241_i32 = arith.constant 241 : i32
    %68 = tpu.dynamic_rotate %31 by %c241_i32 dim 1 : vector<32x256xf32>, i32 -> vector<32x256xf32>
    %c6 = arith.constant 6 : index
    %c0_29 = arith.constant 0 : index
    %c0_30 = arith.constant 0 : index
    %69 = vector.load %arg7[%c6, %c0_29, %c0_30] : memref<9x1x256xf32, #tpu.memory_space<vmem>>, vector<1x1x256xf32>
    %70 = vector.shape_cast %69 : vector<1x1x256xf32> to vector<1x256xf32>
    %71 = vector.broadcast %70 : vector<1x256xf32> to vector<32x256xf32>
    %72 = arith.mulf %68, %71 : vector<32x256xf32>
    %73 = arith.truncf %72 : vector<32x256xf32> to vector<32x256xbf16>
    %c240_i32 = arith.constant 240 : i32
    %74 = tpu.dynamic_rotate %31 by %c240_i32 dim 1 : vector<32x256xf32>, i32 -> vector<32x256xf32>
    %c7 = arith.constant 7 : index
    %c0_31 = arith.constant 0 : index
    %c0_32 = arith.constant 0 : index
    %75 = vector.load %arg7[%c7, %c0_31, %c0_32] : memref<9x1x256xf32, #tpu.memory_space<vmem>>, vector<1x1x256xf32>
    %76 = vector.shape_cast %75 : vector<1x1x256xf32> to vector<1x256xf32>
    %77 = vector.broadcast %76 : vector<1x256xf32> to vector<32x256xf32>
    %78 = arith.mulf %74, %77 : vector<32x256xf32>
    %79 = arith.truncf %78 : vector<32x256xf32> to vector<32x256xbf16>
    %c239_i32 = arith.constant 239 : i32
    %80 = tpu.dynamic_rotate %31 by %c239_i32 dim 1 : vector<32x256xf32>, i32 -> vector<32x256xf32>
    %c8 = arith.constant 8 : index
    %c0_33 = arith.constant 0 : index
    %c0_34 = arith.constant 0 : index
    %81 = vector.load %arg7[%c8, %c0_33, %c0_34] : memref<9x1x256xf32, #tpu.memory_space<vmem>>, vector<1x1x256xf32>
    %82 = vector.shape_cast %81 : vector<1x1x256xf32> to vector<1x256xf32>
    %83 = vector.broadcast %82 : vector<1x256xf32> to vector<32x256xf32>
    %84 = arith.mulf %80, %83 : vector<32x256xf32>
    %85 = arith.truncf %84 : vector<32x256xf32> to vector<32x256xbf16>
    %86 = tpu.concatenate %38, %44, %50, %56, %61, %67, %73, %79, %85 in 0 : vector<32x256xbf16>, vector<32x256xbf16>, vector<32x256xbf16>, vector<32x256xbf16>, vector<32x256xbf16>, vector<32x256xbf16>, vector<32x256xbf16>, vector<32x256xbf16>, vector<32x256xbf16> -> vector<288x256xbf16>
    %cst_35 = arith.constant dense<0.000000e+00> : vector<32x256xf32>
    %87 = tpu.matmul %32, %86, %cst_35 {dimension_numbers = #tpu.dot_dimension_numbers<[1], [0], [0], [1], [0, 0, 1, 1], [], []>} : vector<32x288xbf16>, vector<288x256xbf16>, vector<32x256xf32> -> vector<32x256xf32>
    %c0_36 = arith.constant 0 : index
    %c0_37 = arith.constant 0 : index
    %88 = vector.load %arg6[%c0_36, %c0_37] : memref<32x1xf32, #tpu.memory_space<vmem>>, vector<32x1xf32>
    %89 = vector.broadcast %88 : vector<32x1xf32> to vector<32x256xf32>
    %90 = arith.addf %87, %89 : vector<32x256xf32>
    %c0_38 = arith.constant 0 : index
    %c0_39 = arith.constant 0 : index
    %c0_40 = arith.constant 0 : index
    %91 = vector.load %arg8[%c0_38, %c0_39, %c0_40] : memref<1x32x1xf32, #tpu.memory_space<vmem>>, vector<1x32x1xf32>
    %92 = vector.shape_cast %91 : vector<1x32x1xf32> to vector<32x1xf32>
    %93 = vector.broadcast %92 : vector<32x1xf32> to vector<32x256xf32>
    %94 = arith.addf %90, %93 : vector<32x256xf32>
    %c0_41 = arith.constant 0 : index
    %c0_42 = arith.constant 0 : index
    %c0_43 = arith.constant 0 : index
    %95 = vector.load %arg9[%c0_41, %c0_42, %c0_43] : memref<1x32x256xf32, #tpu.memory_space<vmem>>, vector<1x32x256xf32>
    %96 = vector.shape_cast %95 : vector<1x32x256xf32> to vector<32x256xf32>
    %97 = vector.shape_cast %94 : vector<32x256xf32> to vector<1x32x256xf32>
    tpu.vector_store %arg9[%c0_41, %c0_42, %c0_43], %97 {strides = array<i32>} : memref<1x32x256xf32, #tpu.memory_space<vmem>>, vector<1x32x256xf32>,
    return
  }
  func.func @transform_0(%arg0: i32) -> (i32, i32, i32) {
    %c0_i32 = arith.constant 0 : i32
    %c0_i32_0 = arith.constant 0 : i32
    %c0_i32_1 = arith.constant 0 : i32
    return %arg0, %c0_i32, %c0_i32_0 : i32, i32, i32
  }
  func.func @transform_1(%arg0: i32) -> (i32, i32) {
    %c0_i32 = arith.constant 0 : i32
    %c0_i32_0 = arith.constant 0 : i32
    %c0_i32_1 = arith.constant 0 : i32
    return %c0_i32, %c0_i32_0 : i32, i32
  }
  func.func @transform_2(%arg0: i32) -> (i32, i32) {
    %c0_i32 = arith.constant 0 : i32
    %c0_i32_0 = arith.constant 0 : i32
    %c0_i32_1 = arith.constant 0 : i32
    return %c0_i32, %c0_i32_0 : i32, i32
  }
  func.func @transform_3(%arg0: i32) -> (i32, i32) {
    %c0_i32 = arith.constant 0 : i32
    %c0_i32_0 = arith.constant 0 : i32
    %c0_i32_1 = arith.constant 0 : i32
    return %c0_i32, %c0_i32_0 : i32, i32
  }
  func.func @transform_4(%arg0: i32) -> (i32, i32) {
    %c0_i32 = arith.constant 0 : i32
    %c0_i32_0 = arith.constant 0 : i32
    %c0_i32_1 = arith.constant 0 : i32
    return %c0_i32, %c0_i32_0 : i32, i32
  }
  func.func @transform_5(%arg0: i32) -> (i32, i32) {
    %c0_i32 = arith.constant 0 : i32
    %c0_i32_0 = arith.constant 0 : i32
    %c0_i32_1 = arith.constant 0 : i32
    return %c0_i32, %c0_i32_0 : i32, i32
  }
  func.func @transform_6(%arg0: i32) -> (i32, i32, i32) {
    %c0_i32 = arith.constant 0 : i32
    %c0_i32_0 = arith.constant 0 : i32
    %c0_i32_1 = arith.constant 0 : i32
    %c0_i32_2 = arith.constant 0 : i32
    return %c0_i32, %c0_i32_0, %c0_i32_1 : i32, i32, i32
  }
  func.func @transform_7(%arg0: i32) -> (i32, i32, i32) {
    %c0_i32 = arith.constant 0 : i32
    %c0_i32_0 = arith.constant 0 : i32
    %c0_i32_1 = arith.constant 0 : i32
    return %arg0, %c0_i32, %c0_i32_0 : i32, i32, i32
  }
  func.func @transform_8(%arg0: i32) -> (i32, i32, i32) {
    %c0_i32 = arith.constant 0 : i32
    %c0_i32_0 = arith.constant 0 : i32
    %c0_i32_1 = arith.constant 0 : i32
    return %arg0, %c0_i32, %c0_i32_0 : i32, i32, i32
  }
}

</mosaic_0001>

<llo_original>
// kernel: tpu_custom_call.1
$region0: #{tpu_custom_call.1}
  #allocation0 [shape = 'u32[]', space=smem, size = 0x4, offset = 0x4, fixed_abs, tag = 'smem constant byte address 0x4 - core index']
  #allocation1 [shape = 'u32[144,128]{1,0:T(1,128)}', space=vmem, size = 0x12000, scoped, tag = 'internal scratch']
  %s0 = inlined_call_operand.vmem [shape: f32[2,32,256], index: 0, kind: input, shape index: {}]
  %s1 = inlined_call_operand.hbm [shape: f32[32,32], index: 1, kind: input, shape index: {}]
  %s2 = inlined_call_operand.vmem [shape: f32[32,1], index: 2, kind: input, shape index: {}]
  %s3 = inlined_call_operand.vmem [shape: f32[32,1], index: 3, kind: input, shape index: {}]
  %s4 = inlined_call_operand.vmem [shape: bf16[32,288], index: 4, kind: input, shape index: {}]
  %s5 = inlined_call_operand.vmem [shape: f32[32,1], index: 5, kind: input, shape index: {}]
  %s6 = inlined_call_operand.hbm [shape: f32[9,1,256], index: 6, kind: input, shape index: {}]
  %s7 = inlined_call_operand.vmem [shape: f32[2,32,1], index: 7, kind: input, shape index: {}]
  %s8 = inlined_call_operand.hbm [shape: f32[2,32,256], index: 8, kind: output, shape index: {}]
  %s9 = sld [smem:[#allocation0]]
  $region73: #{tpu_custom_call.1} parent=0
    _
  %s11 = ssub.s32 1, %s9
  %s12 = scalar_select 0, %s11, %s9
  $region1: #{tpu_custom_call.1} parent=0
    #allocation2 [shape = 'u8[16384]{0}', space=vmem, size = 0x4000, scoped, tag = 'input window, operand 1, single buffered']
    #allocation3 [shape = 's32[2]{0}', space=sflag, size = 0x8, scoped, tag = 'scoped memory for tpu_custom_call.1']
    #allocation4 [shape = 's32[2]{0}', space=sflag, size = 0x8, scoped, tag = 'scoped memory for tpu_custom_call.1']
    #allocation5 [shape = 'u8[9216]{0}', space=vmem, size = 0x2400, scoped, tag = 'input window, operand 6, single buffered']
    #allocation6 [shape = 's32[1]{0}', space=sflag, size = 0x4, scoped, tag = 'scoped memory for tpu_custom_call.1']
    #allocation7 [shape = 'u8[65536]{0}', space=vmem, size = 0x10000, scoped, tag = 'output window, operand 0']
    %13 = vsyncpa [#allocation3], 0
    %14 = vsyncpa [#allocation6], 0
    %15 = vsyncpa [#allocation4], 0
    %s16 = scalar_lea.sflag [#allocation4], 1
    %17 = vsyncpa %s16, 0
    loop: start=0, step=1, limit=4
    $region2: #{tpu_custom_call.1} parent=1 // loop_pre_header
      _
    $region3: #{tpu_custom_call.1} parent=1 // loop_header
      %s19 = sphi 0, %s23
      %p20 = scmp.ge.s32.totalorder %s19, 4
      %s29 = sphi 0, %s31
      %s32 = sphi 0, %s29
      %s33 = sphi 0, %s32
      %s49 = sphi 0, %s33
      %s53 = sphi 0, %s53
      %s55 = sphi 0, %s53
      %s56 = sphi 0, %s55
      %s70 = sphi 0, %s56
      %s74 = sphi 0, %s74
      %s76 = sphi 0, %s74
      %s77 = sphi 0, %s76
      %s91 = sphi 0, %s77
      %s95 = sphi 0, %s95
      %s97 = sphi 0, %s95
      %s98 = sphi 0, %s97
      %s112 = sphi 0, %s98
      %s116 = sphi 0, %s116
      %s118 = sphi 0, %s116
      %s119 = sphi 0, %s118
      %s133 = sphi 0, %s119
      %s137 = sphi 0, %s137
      %s139 = sphi 0, %s137
      %s140 = sphi 0, %s139
      %s154 = sphi 0, %s140
      %s158 = sphi 0, %s158
      %s160 = sphi 0, %s158
      %s161 = sphi 0, %s160
      %s175 = sphi 0, %s161
      %s181 = sphi 0, %s183
      %s184 = sphi 0, %s181
      %s185 = sphi 0, %s184
      %s201 = sphi 0, %s185
      %s207 = sphi 0, %s209
      %s210 = sphi 0, %s207
      %s211 = sphi 0, %s210
      %s227 = sphi 0, %s211
    $region4: #{tpu_custom_call.1} parent=1 // loop_header_branch
      %22 = sbr.rel (%p20) target = $region8
    $region5: #{tpu_custom_call.1} parent=1 // loop_body
      %s24 = ssub.s32 %s19, 1
      %s25 = ssub.s32 %s19, 2
      %s26 = sadd.s32 %s19, 1
      %s27 = ssub.s32 %s19, %s26
      %p28 = scmp.eq.s32.totalorder %s27, 0
      %s30 = sadd.s32 %s29, 1
      %s31 = scalar_select %p28, %s29, %s30
      %p34 = pneg %p28
      %p35 = scmp.eq.s32.totalorder %s19, 1
      %p36 = por %p34, %p35
      %p37 = scmp.ne.s32.totalorder %s29, %s32
      %p38 = scmp.eq.s32.totalorder %s19, 0
      %p39 = por %p37, %p38
      %p40 = scmp.ne.s32.totalorder %s29, %s32
      %p41 = scmp.eq.s32.totalorder %s24, 1
      %p42 = por %p40, %p41
      %p43 = scmp.ne.s32.totalorder %s32, %s33
      %p44 = scmp.eq.s32.totalorder %s24, 0
      %p45 = por %p43, %p44
      %p46 = scmp.ne.s32.totalorder %s32, %s33
      %p47 = scmp.eq.s32.totalorder %s25, 1
      %p48 = por %p46, %p47
      %p50 = scmp.ne.s32.totalorder %s33, %s49
      %p51 = scmp.eq.s32.totalorder %s25, 0
      %p52 = por %p50, %p51
      %s54 = sadd.s32 %s53, 1
      %p57 = scmp.eq.s32.totalorder %s19, 1
      %p58 = scmp.ne.s32.totalorder %s53, %s55
      %p59 = scmp.eq.s32.totalorder %s19, 0
      %p60 = por %p58, %p59
      %p61 = scmp.ne.s32.totalorder %s53, %s55
      %p62 = scmp.eq.s32.totalorder %s24, 1
      %p63 = por %p61, %p62
      %p64 = scmp.ne.s32.totalorder %s55, %s56
      %p65 = scmp.eq.s32.totalorder %s24, 0
      %p66 = por %p64, %p65
      %p67 = scmp.ne.s32.totalorder %s55, %s56
      %p68 = scmp.eq.s32.totalorder %s25, 1
      %p69 = por %p67, %p68
      %p71 = scmp.ne.s32.totalorder %s56, %s70
      %p72 = scmp.eq.s32.totalorder %s25, 0
      %p73 = por %p71, %p72
      %s75 = sadd.s32 %s74, 1
      %p78 = scmp.eq.s32.totalorder %s19, 1
      %p79 = scmp.ne.s32.totalorder %s74, %s76
      %p80 = scmp.eq.s32.totalorder %s19, 0
      %p81 = por %p79, %p80
      %p82 = scmp.ne.s32.totalorder %s74, %s76
      %p83 = scmp.eq.s32.totalorder %s24, 1
      %p84 = por %p82, %p83
      %p85 = scmp.ne.s32.totalorder %s76, %s77
      %p86 = scmp.eq.s32.totalorder %s24, 0
      %p87 = por %p85, %p86
      %p88 = scmp.ne.s32.totalorder %s76, %s77
      %p89 = scmp.eq.s32.totalorder %s25, 1
      %p90 = por %p88, %p89
      %p92 = scmp.ne.s32.totalorder %s77, %s91
      %p93 = scmp.eq.s32.totalorder %s25, 0
      %p94 = por %p92, %p93
      %s96 = sadd.s32 %s95, 1
      %p99 = scmp.eq.s32.totalorder %s19, 1
      %p100 = scmp.ne.s32.totalorder %s95, %s97
      %p101 = scmp.eq.s32.totalorder %s19, 0
      %p102 = por %p100, %p101
      %p103 = scmp.ne.s32.totalorder %s95, %s97
      %p104 = scmp.eq.s32.totalorder %s24, 1
      %p105 = por %p103, %p104
      %p106 = scmp.ne.s32.totalorder %s97, %s98
      %p107 = scmp.eq.s32.totalorder %s24, 0
      %p108 = por %p106, %p107
      %p109 = scmp.ne.s32.totalorder %s97, %s98
      %p110 = scmp.eq.s32.totalorder %s25, 1
      %p111 = por %p109, %p110
      %p113 = scmp.ne.s32.totalorder %s98, %s112
      %p114 = scmp.eq.s32.totalorder %s25, 0
      %p115 = por %p113, %p114
      %s117 = sadd.s32 %s116, 1
      %p120 = scmp.eq.s32.totalorder %s19, 1
      %p121 = scmp.ne.s32.totalorder %s116, %s118
      %p122 = scmp.eq.s32.totalorder %s19, 0
      %p123 = por %p121, %p122
      %p124 = scmp.ne.s32.totalorder %s116, %s118
      %p125 = scmp.eq.s32.totalorder %s24, 1
      %p126 = por %p124, %p125
      %p127 = scmp.ne.s32.totalorder %s118, %s119
      %p128 = scmp.eq.s32.totalorder %s24, 0
      %p129 = por %p127, %p128
      %p130 = scmp.ne.s32.totalorder %s118, %s119
      %p131 = scmp.eq.s32.totalorder %s25, 1
      %p132 = por %p130, %p131
      %p134 = scmp.ne.s32.totalorder %s119, %s133
      %p135 = scmp.eq.s32.totalorder %s25, 0
      %p136 = por %p134, %p135
      %s138 = sadd.s32 %s137, 1
      %p141 = scmp.eq.s32.totalorder %s19, 1
      %p142 = scmp.ne.s32.totalorder %s137, %s139
      %p143 = scmp.eq.s32.totalorder %s19, 0
      %p144 = por %p142, %p143
      %p145 = scmp.ne.s32.totalorder %s137, %s139
      %p146 = scmp.eq.s32.totalorder %s24, 1
      %p147 = por %p145, %p146
      %p148 = scmp.ne.s32.totalorder %s139, %s140
      %p149 = scmp.eq.s32.totalorder %s24, 0
      %p150 = por %p148, %p149
      %p151 = scmp.ne.s32.totalorder %s139, %s140
      %p152 = scmp.eq.s32.totalorder %s25, 1
      %p153 = por %p151, %p152
      %p155 = scmp.ne.s32.totalorder %s140, %s154
      %p156 = scmp.eq.s32.totalorder %s25, 0
      %p157 = por %p155, %p156
      %s159 = sadd.s32 %s158, 1
      %p162 = scmp.eq.s32.totalorder %s19, 1
      %p163 = scmp.ne.s32.totalorder %s158, %s160
      %p164 = scmp.eq.s32.totalorder %s19, 0
      %p165 = por %p163, %p164
      %p166 = scmp.ne.s32.totalorder %s158, %s160
      %p167 = scmp.eq.s32.totalorder %s24, 1
      %p168 = por %p166, %p167
      %p169 = scmp.ne.s32.totalorder %s160, %s161
      %p170 = scmp.eq.s32.totalorder %s24, 0
      %p171 = por %p169, %p170
      %p172 = scmp.ne.s32.totalorder %s160, %s161
      %p173 = scmp.eq.s32.totalorder %s25, 1
      %p174 = por %p172, %p173
      %p176 = scmp.ne.s32.totalorder %s161, %s175
      %p177 = scmp.eq.s32.totalorder %s25, 0
      %p178 = por %p176, %p177
      %s179 = ssub.s32 %s19, %s26
      %p180 = scmp.eq.s32.totalorder %s179, 0
      %s182 = sadd.s32 %s181, 1
      %s183 = scalar_select %p180, %s181, %s182
      %p186 = pneg %p180
      %p187 = scmp.eq.s32.totalorder %s19, 1
      %p188 = por %p186, %p187
      %p189 = scmp.ne.s32.totalorder %s181, %s184
      %p190 = scmp.eq.s32.totalorder %s19, 0
      %p191 = por %p189, %p190
      %p192 = scmp.ne.s32.totalorder %s181, %s184
      %p193 = scmp.eq.s32.totalorder %s24, 1
      %p194 = por %p192, %p193
      %p195 = scmp.ne.s32.totalorder %s184, %s185
      %p196 = scmp.eq.s32.totalorder %s24, 0
      %p197 = por %p195, %p196
      %p198 = scmp.ne.s32.totalorder %s184, %s185
      %p199 = scmp.eq.s32.totalorder %s25, 1
      %p200 = por %p198, %p199
      %p202 = scmp.ne.s32.totalorder %s185, %s201
      %p203 = scmp.eq.s32.totalorder %s25, 0
      %p204 = por %p202, %p203
      %s205 = ssub.s32 %s19, %s26
      %p206 = scmp.eq.s32.totalorder %s205, 0
      %s208 = sadd.s32 %s207, 1
      %s209 = scalar_select %p206, %s207, %s208
      %p212 = pneg %p206
      %p213 = scmp.eq.s32.totalorder %s19, 1
      %p214 = por %p212, %p213
      %p215 = scmp.ne.s32.totalorder %s207, %s210
      %p216 = scmp.eq.s32.totalorder %s19, 0
      %p217 = por %p215, %p216
      %p218 = scmp.ne.s32.totalorder %s207, %s210
      %p219 = scmp.eq.s32.totalorder %s24, 1
      %p220 = por %p218, %p219
      %p221 = scmp.ne.s32.totalorder %s210, %s211
      %p222 = scmp.eq.s32.totalorder %s24, 0
      %p223 = por %p221, %p222
      %p224 = scmp.ne.s32.totalorder %s210, %s211
      %p225 = scmp.eq.s32.totalorder %s25, 1
      %p226 = por %p224, %p225
      %p228 = scmp.ne.s32.totalorder %s211, %s227
      %p229 = scmp.eq.s32.totalorder %s25, 0
      %p230 = por %p228, %p229
      %p231 = scmp.le.s32.totalorder 1, %s19
      %p232 = scmp.lt.s32.totalorder %s19, 3
      %p233 = pnand %p231, %p232
      %p234 = pneg %p233
      // Predicated region
      $region9: #{tpu_custom_call.1} parent=5 // pred_check
        _
      $region10: #{tpu_custom_call.1} parent=5 // pred_check_branch
        %236 = sbr.rel (%p233) target = $region12
      $region11: #{tpu_custom_call.1} parent=5 // pred_region
        %s237 = ssub.s32 %s19, 1
        // Predicated region
        $region13: #{tpu_custom_call.1} parent=11 // pred_check
          %p238 = pneg %p66
        $region14: #{tpu_custom_call.1} parent=11 // pred_check_branch
          %240 = sbr.rel (%p238) target = $region16
        $region15: #{tpu_custom_call.1} parent=11 // pred_region
          %s242 = ssub.s32 512, 512
          %243 = vsyncadd [#allocation3], %s242
          %s244 = sshll.u32 [#allocation2], 4
          %s245 = int_to_ptr.vmem [resolvable:$true] %s244
          %250 = dma.hbm_to_vmem [thread:$0]  %s1, 512, %s245, [#allocation3], 128, 128, 8
        $region16: #{tpu_custom_call.1} parent=11 // pred_fallthru
          _
        // Predicated region
        $region17: #{tpu_custom_call.1} parent=11 // pred_check
          %p251 = pneg %p87
        $region18: #{tpu_custom_call.1} parent=11 // pred_check_branch
          %253 = sbr.rel (%p251) target = $region20
        $region19: #{tpu_custom_call.1} parent=11 // pred_region
          _
        $region20: #{tpu_custom_call.1} parent=11 // pred_fallthru
          _
        // Predicated region
        $region21: #{tpu_custom_call.1} parent=11 // pred_check
          %p254 = pneg %p108
        $region22: #{tpu_custom_call.1} parent=11 // pred_check_branch
          %256 = sbr.rel (%p254) target = $region24
        $region23: #{tpu_custom_call.1} parent=11 // pred_region
          _
        $region24: #{tpu_custom_call.1} parent=11 // pred_fallthru
          _
        // Predicated region
        $region25: #{tpu_custom_call.1} parent=11 // pred_check
          %p257 = pneg %p129
        $region26: #{tpu_custom_call.1} parent=11 // pred_check_branch
          %259 = sbr.rel (%p257) target = $region28
        $region27: #{tpu_custom_call.1} parent=11 // pred_region
          _
        $region28: #{tpu_custom_call.1} parent=11 // pred_fallthru
          _
        // Predicated region
        $region29: #{tpu_custom_call.1} parent=11 // pred_check
          %p260 = pneg %p150
        $region30: #{tpu_custom_call.1} parent=11 // pred_check_branch
          %262 = sbr.rel (%p260) target = $region32
        $region31: #{tpu_custom_call.1} parent=11 // pred_region
          _
        $region32: #{tpu_custom_call.1} parent=11 // pred_fallthru
          _
        // Predicated region
        $region33: #{tpu_custom_call.1} parent=11 // pred_check
          %p263 = pneg %p171
        $region34: #{tpu_custom_call.1} parent=11 // pred_check_branch
          %265 = sbr.rel (%p263) target = $region36
        $region35: #{tpu_custom_call.1} parent=11 // pred_region
          %s267 = ssub.s32 288, 288
          %268 = vsyncadd [#allocation6], %s267
          %s269 = sshll.u32 [#allocation5], 4
          %s270 = int_to_ptr.vmem [resolvable:$true] %s269
          %275 = dma.hbm_to_vmem [thread:$0]  %s6, 288, %s270, [#allocation6], 32, 32, 2
        $region36: #{tpu_custom_call.1} parent=11 // pred_fallthru
          _
      $region12: #{tpu_custom_call.1} parent=5 // pred_fallthru
        _
      %p276 = scmp.lt.s32.totalorder %s19, 2
      // Predicated region
      $region37: #{tpu_custom_call.1} parent=5 // pred_check
        %p277 = pneg %p276
      $region38: #{tpu_custom_call.1} parent=5 // pred_check_branch
        %279 = sbr.rel (%p277) target = $region40
      $region39: #{tpu_custom_call.1} parent=5 // pred_region
        // Predicated region
        $region41: #{tpu_custom_call.1} parent=39 // pred_check
          %p280 = pneg %p39
        $region42: #{tpu_custom_call.1} parent=39 // pred_check_branch
          %282 = sbr.rel (%p280) target = $region44
        $region43: #{tpu_custom_call.1} parent=39 // pred_region
          %p283 = scmp.lt.s32.totalorder %s19, 1
          %s284 = scalar_select %p283, %s19, 1
          %s285 = smul.addr %s284, 8
          %s286 = smul.addr %s285, 8
          %s287 = scalar_lea.vmem %s0, %s286
        $region44: #{tpu_custom_call.1} parent=39 // pred_fallthru
          _
        // Predicated region
        $region45: #{tpu_custom_call.1} parent=39 // pred_check
          %p288 = pneg %p191
        $region46: #{tpu_custom_call.1} parent=39 // pred_check_branch
          %290 = sbr.rel (%p288) target = $region48
        $region47: #{tpu_custom_call.1} parent=39 // pred_region
          %p291 = scmp.lt.s32.totalorder %s19, 1
          %s292 = scalar_select %p291, %s19, 1
          %s293 = smul.addr %s292, 4
          %s294 = smul.addr %s293, 8
          %s295 = scalar_lea.vmem %s7, %s294
        $region48: #{tpu_custom_call.1} parent=39 // pred_fallthru
          _
      $region40: #{tpu_custom_call.1} parent=5 // pred_fallthru
        _
      %p296 = scmp.le.s32.totalorder 1, %s19
      %p297 = scmp.lt.s32.totalorder %s19, 3
      %p298 = pnand %p296, %p297
      %p299 = pneg %p298
      // Predicated region
      $region49: #{tpu_custom_call.1} parent=5 // pred_check
        _
      $region50: #{tpu_custom_call.1} parent=5 // pred_check_branch
        %301 = sbr.rel (%p298) target = $region52
      $region51: #{tpu_custom_call.1} parent=5 // pred_region
        %s302 = ssub.s32 %s19, 1
        // Predicated region
        $region53: #{tpu_custom_call.1} parent=51 // pred_check
          %p303 = pneg %p66
        $region54: #{tpu_custom_call.1} parent=51 // pred_check_branch
          %305 = sbr.rel (%p303) target = $region56
        $region55: #{tpu_custom_call.1} parent=51 // pred_region
          %306 = dma.done [#allocation3], 512
        $region56: #{tpu_custom_call.1} parent=51 // pred_fallthru
          _
        // Predicated region
        $region57: #{tpu_custom_call.1} parent=51 // pred_check
          %p307 = pneg %p171
        $region58: #{tpu_custom_call.1} parent=51 // pred_check_branch
          %309 = sbr.rel (%p307) target = $region60
        $region59: #{tpu_custom_call.1} parent=51 // pred_region
          %310 = dma.done [#allocation6], 288
        $region60: #{tpu_custom_call.1} parent=51 // pred_fallthru
          _
        %p311 = scmp.lt.s32.totalorder %s24, 1
        %s312 = scalar_select %p311, %s24, 1
        %s313 = smul.addr %s312, 8
        %s314 = smul.addr %s313, 8
        %s315 = scalar_lea.vmem %s0, %s314
        %p316 = pneg %p45
        %p317 = pneg %p42
        %p318 = pneg %p66
        %p319 = pneg %p63
        %p320 = pneg %p87
        %p321 = pneg %p84
        %p322 = pneg %p108
        %p323 = pneg %p105
        %p324 = pneg %p129
        %p325 = pneg %p126
        %p326 = pneg %p150
        %p327 = pneg %p147
        %p328 = pneg %p171
        %p329 = pneg %p168
        %p330 = scmp.lt.s32.totalorder %s24, 1
        %s331 = scalar_select %p330, %s24, 1
        %s332 = smul.addr %s331, 4
        %s333 = smul.addr %s332, 8
        %s334 = scalar_lea.vmem %s7, %s333
        %p335 = pneg %p197
        %p336 = pneg %p194
        %p337 = pneg %p223
        %p338 = pneg %p220
        %s339 = sand.u32 %s210, 1
        %s340 = scalar_lea.sflag [#allocation4], %s339
        %s341 = sand.u32 %s210, 1
        %s342 = smul.addr %s341, 64
        %s343 = scalar_lea.vmem [#allocation7], %s342
        %p344 = scmp.lt.s32.totalorder %s24, 1
        %s345 = scalar_select %p344, %s24, 1
        %s346 = smul.addr %s345, 8
        %s347 = smul.addr %s346, 8
        %s348 = scalar_lea.vmem %s0, %s347
        %p349 = scmp.lt.s32.totalorder %s24, 1
        %s350 = scalar_select %p349, %s24, 1
        %s351 = smul.addr %s350, 4
        %s352 = smul.addr %s351, 8
        %s353 = scalar_lea.vmem %s7, %s352
        %v355 = vld [vmem:[%s348] sm:$0xff]
        %v356 = vld [vmem:[%s348 + $0x8] sm:$0xff]
        %v357 = vld [vmem:[%s348 + $0x10] sm:$0xff]
        %v358 = vld [vmem:[%s348 + $0x18] sm:$0xff]
        %v359 = vld [vmem:[%s348 + $0x20] sm:$0xff]
        %v360 = vld [vmem:[%s348 + $0x28] sm:$0xff]
        %v361 = vld [vmem:[%s348 + $0x30] sm:$0xff]
        %v362 = vld [vmem:[%s348 + $0x38] sm:$0xff]
        %v363 = vld [vmem:[#allocation2] sm:$0xff]
        %v364 = vld [vmem:[#allocation2 + $0x8] sm:$0xff]
        %v365 = vld [vmem:[#allocation2 + $0x10] sm:$0xff]
        %v366 = vld [vmem:[#allocation2 + $0x18] sm:$0xff]
        %v367 = vld [vmem:[%s2] sm:$0xff]
        %v368 = vld [vmem:[%s2 + $0x8] sm:$0xff]
        %v369 = vld [vmem:[%s2 + $0x10] sm:$0xff]
        %v370 = vld [vmem:[%s2 + $0x18] sm:$0xff]
        %v371 = vld [vmem:[%s3] sm:$0xff]
        %v372 = vld [vmem:[%s3 + $0x8] sm:$0xff]
        %v373 = vld [vmem:[%s3 + $0x10] sm:$0xff]
        %v374 = vld [vmem:[%s3 + $0x18] sm:$0xff]
        %v375 = vadd.f32 %v355, %v356
        %376 = vadd.xlane.f32.xlu0 %v375
        %v377 = vpop.xlane.xlu0 %376
        %v378 = vadd.f32 %v357, %v358
        %379 = vadd.xlane.f32.xlu0 %v378
        %v380 = vpop.xlane.xlu0 %379
        %v381 = vadd.f32 %v359, %v360
        %382 = vadd.xlane.f32.xlu0 %v381
        %v383 = vpop.xlane.xlu0 %382
        %v384 = vadd.f32 %v361, %v362
        %385 = vadd.xlane.f32.xlu0 %v384
        %v386 = vpop.xlane.xlu0 %385
        %v387 = vmul.f32 %v355, %v355
        %v388 = vmul.f32 %v356, %v356
        %v389 = vmul.f32 %v357, %v357
        %v390 = vmul.f32 %v358, %v358
        %v391 = vmul.f32 %v359, %v359
        %v392 = vmul.f32 %v360, %v360
        %v393 = vmul.f32 %v361, %v361
        %v394 = vmul.f32 %v362, %v362
        %v395 = vadd.f32 %v387, %v388
        %396 = vadd.xlane.f32.xlu0 %v395
        %v397 = vpop.xlane.xlu0 %396
        %v398 = vadd.f32 %v389, %v390
        %399 = vadd.xlane.f32.xlu0 %v398
        %v400 = vpop.xlane.xlu0 %399
        %v401 = vadd.f32 %v391, %v392
        %402 = vadd.xlane.f32.xlu0 %v401
        %v403 = vpop.xlane.xlu0 %402
        %v404 = vadd.f32 %v393, %v394
        %405 = vadd.xlane.f32.xlu0 %v404
        %v406 = vpop.xlane.xlu0 %405
        %vm407 = vcmask 261120
        %v409 = vsel %vm407, %v363, 0
        %v412 = vsel %vm407, %v364, 0
        %v415 = vsel %vm407, %v365, 0
        %v418 = vsel %vm407, %v366, 0
        %420 = vmatprep.subr.mxu0 0.0
        %v421 = vand.u32 %v377, 4294901760
        %422 = vmatpush1.msra.mxu0 %v421
        %423 = vmatprep.subr.mxu0 0.0
        %v424 = vand.u32 %v380, 4294901760
        %425 = vmatpush1.msra.mxu0 %v424
        %426 = vmatprep.subr.mxu0 0.0
        %v427 = vand.u32 %v383, 4294901760
        %428 = vmatpush1.msra.mxu0 %v427
        %429 = vmatprep.subr.mxu0 0.0
        %v430 = vand.u32 %v386, 4294901760
        %431 = vmatpush1.msra.mxu0 %v430
        %432 = vmatprep.subr.mxu0 0.0
        %433 = vmatpush1.msra.mxu0 0.0
        %434 = vmatprep.subr.mxu0 0.0
        %435 = vmatpush1.msra.mxu0 0.0
        %436 = vmatprep.subr.mxu0 0.0
        %437 = vmatpush1.msra.mxu0 0.0
        %438 = vmatprep.subr.mxu0 0.0
        %439 = vmatpush1.msra.mxu0 0.0
        %440 = vmatprep.subr.mxu0 0.0
        %441 = vmatpush1.msra.mxu0 0.0
        %442 = vmatprep.subr.mxu0 0.0
        %443 = vmatpush1.msra.mxu0 0.0
        %444 = vmatprep.subr.mxu0 0.0
        %445 = vmatpush1.msra.mxu0 0.0
        %446 = vmatprep.subr.mxu0 0.0
        %447 = vmatpush1.msra.mxu0 0.0
        %448 = vmatprep.subr.mxu0 0.0
        %449 = vmatpush1.msra.mxu0 0.0
        %450 = vmatprep.subr.mxu0 0.0
        %451 = vmatpush1.msra.mxu0 0.0
        %452 = vmatprep.subr.mxu0 0.0
        %453 = vmatpush1.msra.mxu0 0.0
        %454 = vmatprep.subr.mxu0 0.0
        %455 = vmatpush1.msra.mxu0 0.0
        %456 = vmatprep.subr.mxu0 0.0
        %457 = vmatpush1.msra.mxu0 0.0
        %458 = vmatprep.subr.mxu0 0.0
        %459 = vmatpush1.msra.mxu0 0.0
        %460 = vmatprep.subr.mxu0 0.0
        %461 = vmatpush1.msra.mxu0 0.0
        %462 = vmatprep.subr.mxu0 0.0
        %463 = vmatpush1.msra.mxu0 0.0
        %464 = vmatprep.subr.mxu0 0.0
        %465 = vmatpush1.msra.mxu0 0.0
        %466 = vmatprep.subr.mxu0 0.0
        %467 = vmatpush1.msra.mxu0 0.0
        %468 = vmatprep.subr.mxu0 0.0
        %469 = vmatpush1.msra.mxu0 0.0
        %470 = vmatprep.subr.mxu0 0.0
        %471 = vmatpush1.msra.mxu0 0.0
        %472 = vmatprep.subr.mxu0 0.0
        %473 = vmatpush1.msra.mxu0 0.0
        %474 = vmatprep.subr.mxu0 0.0
        %475 = vmatpush1.msra.mxu0 0.0
        %476 = vmatprep.subr.mxu0 0.0
        %477 = vmatpush1.msra.mxu0 0.0
        %478 = vmatprep.subr.mxu0 0.0
        %479 = vmatpush1.msra.mxu0 0.0
        %480 = vmatprep.subr.mxu0 0.0
        %481 = vmatpush1.msra.mxu0 0.0
        %482 = vmatprep.subr.mxu0 0.0
        %483 = vmatpush1.msra.mxu0 0.0
        %484 = vmatprep.subr.mxu0 0.0
        %485 = vmatpush1.msra.mxu0 0.0
        %486 = vmatprep.subr.mxu0 0.0
        %487 = vmatpush1.msra.mxu0 0.0
        %488 = vmatprep.mubr.f32.mxu0 0.0
        %v489 = vand.u32 %v409, 4294901760
        %v490 = vsub.f32 %v409, %v489
        %v491 = vand.u32 %v490, 4294901760
        %v492 = vsub.f32 %v490, %v491
        %v493 = vand.u32 %v492, 4294901760
        %494 = vmatmul.mubr.f32.gmra.mrb[0].mxu0 %v493
        %v495 = vpop.f32.mrb[0].mxu0
        %v496 = vadd.f32 0.0, %v495
        %v497 = vpop.f32.mrb[0].mxu0
        %498 = vmatprep.mubr.f32.mxu0 0.0
        %v499 = vand.u32 %v412, 4294901760
        %v500 = vsub.f32 %v412, %v499
        %v501 = vand.u32 %v500, 4294901760
        %v502 = vsub.f32 %v500, %v501
        %v503 = vand.u32 %v502, 4294901760
        %504 = vmatmul.mubr.f32.gmra.mrb[0].mxu0 %v503
        %v505 = vpop.f32.mrb[0].mxu0
        %v506 = vadd.f32 0.0, %v505
        %v507 = vpop.f32.mrb[0].mxu0
        %508 = vmatprep.mubr.f32.mxu0 0.0
        %v509 = vand.u32 %v415, 4294901760
        %v510 = vsub.f32 %v415, %v509
        %v511 = vand.u32 %v510, 4294901760
        %v512 = vsub.f32 %v510, %v511
        %v513 = vand.u32 %v512, 4294901760
        %514 = vmatmul.mubr.f32.gmra.mrb[0].mxu0 %v513
        %v515 = vpop.f32.mrb[0].mxu0
        %v516 = vadd.f32 0.0, %v515
        %v517 = vpop.f32.mrb[0].mxu0
        %518 = vmatprep.mubr.f32.mxu0 0.0
        %v519 = vand.u32 %v418, 4294901760
        %v520 = vsub.f32 %v418, %v519
        %v521 = vand.u32 %v520, 4294901760
        %v522 = vsub.f32 %v520, %v521
        %v523 = vand.u32 %v522, 4294901760
        %524 = vmatmul.mubr.f32.gmra.mrb[0].mxu0 %v523
        %v525 = vpop.f32.mrb[0].mxu0
        %v526 = vadd.f32 0.0, %v525
        %v527 = vpop.f32.mrb[0].mxu0
        %528 = vdwg.mxu0
        %529 = vmatprep.subr.mxu0 0.0
        %v530 = vand.u32 %v377, 4294901760
        %v531 = vsub.f32 %v377, %v530
        %v532 = vand.u32 %v531, 4294901760
        %v533 = vsub.f32 %v531, %v532
        %v534 = vand.u32 %v533, 4294901760
        %535 = vmatpush1.msra.mxu0 %v534
        %536 = vmatprep.subr.mxu0 0.0
        %v537 = vand.u32 %v380, 4294901760
        %v538 = vsub.f32 %v380, %v537
        %v539 = vand.u32 %v538, 4294901760
        %v540 = vsub.f32 %v538, %v539
        %v541 = vand.u32 %v540, 4294901760
        %542 = vmatpush1.msra.mxu0 %v541
        %543 = vmatprep.subr.mxu0 0.0
        %v544 = vand.u32 %v383, 4294901760
        %v545 = vsub.f32 %v383, %v544
        %v546 = vand.u32 %v545, 4294901760
        %v547 = vsub.f32 %v545, %v546
        %v548 = vand.u32 %v547, 4294901760
        %549 = vmatpush1.msra.mxu0 %v548
        %550 = vmatprep.subr.mxu0 0.0
        %v551 = vand.u32 %v386, 4294901760
        %v552 = vsub.f32 %v386, %v551
        %v553 = vand.u32 %v552, 4294901760
        %v554 = vsub.f32 %v552, %v553
        %v555 = vand.u32 %v554, 4294901760
        %556 = vmatpush1.msra.mxu0 %v555
        %557 = vmatprep.subr.mxu0 0.0
        %558 = vmatpush1.msra.mxu0 0.0
        %559 = vmatprep.subr.mxu0 0.0
        %560 = vmatpush1.msra.mxu0 0.0
        %561 = vmatprep.subr.mxu0 0.0
        %562 = vmatpush1.msra.mxu0 0.0
        %563 = vmatprep.subr.mxu0 0.0
        %564 = vmatpush1.msra.mxu0 0.0
        %565 = vmatprep.subr.mxu0 0.0
        %566 = vmatpush1.msra.mxu0 0.0
        %567 = vmatprep.subr.mxu0 0.0
        %568 = vmatpush1.msra.mxu0 0.0
        %569 = vmatprep.subr.mxu0 0.0
        %570 = vmatpush1.msra.mxu0 0.0
        %571 = vmatprep.subr.mxu0 0.0
        %572 = vmatpush1.msra.mxu0 0.0
        %573 = vmatprep.subr.mxu0 0.0
        %574 = vmatpush1.msra.mxu0 0.0
        %575 = vmatprep.subr.mxu0 0.0
        %576 = vmatpush1.msra.mxu0 0.0
        %577 = vmatprep.subr.mxu0 0.0
        %578 = vmatpush1.msra.mxu0 0.0
        %579 = vmatprep.subr.mxu0 0.0
        %580 = vmatpush1.msra.mxu0 0.0
        %581 = vmatprep.subr.mxu0 0.0
        %582 = vmatpush1.msra.mxu0 0.0
        %583 = vmatprep.subr.mxu0 0.0
        %584 = vmatpush1.msra.mxu0 0.0
        %585 = vmatprep.subr.mxu0 0.0
        %586 = vmatpush1.msra.mxu0 0.0
        %587 = vmatprep.subr.mxu0 0.0
        %588 = vmatpush1.msra.mxu0 0.0
        %589 = vmatprep.subr.mxu0 0.0
        %590 = vmatpush1.msra.mxu0 0.0
        %591 = vmatprep.subr.mxu0 0.0
        %592 = vmatpush1.msra.mxu0 0.0
        %593 = vmatprep.subr.mxu0 0.0
        %594 = vmatpush1.msra.mxu0 0.0
        %595 = vmatprep.subr.mxu0 0.0
        %596 = vmatpush1.msra.mxu0 0.0
        %597 = vmatprep.subr.mxu0 0.0
        %598 = vmatpush1.msra.mxu0 0.0
        %599 = vmatprep.subr.mxu0 0.0
        %600 = vmatpush1.msra.mxu0 0.0
        %601 = vmatprep.subr.mxu0 0.0
        %602 = vmatpush1.msra.mxu0 0.0
        %603 = vmatprep.subr.mxu0 0.0
        %604 = vmatpush1.msra.mxu0 0.0
        %605 = vmatprep.subr.mxu0 0.0
        %606 = vmatpush1.msra.mxu0 0.0
        %607 = vmatprep.subr.mxu0 0.0
        %608 = vmatpush1.msra.mxu0 0.0
        %609 = vmatprep.subr.mxu0 0.0
        %610 = vmatpush1.msra.mxu0 0.0
        %611 = vmatprep.subr.mxu0 0.0
        %612 = vmatpush1.msra.mxu0 0.0
        %613 = vmatprep.mubr.f32.mxu0 0.0
        %v614 = vand.u32 %v409, 4294901760
        %615 = vmatmul.mubr.f32.gmra.mrb[0].mxu0 %v614
        %v616 = vpop.f32.mrb[0].mxu0
        %v617 = vadd.f32 %v496, %v616
        %v618 = vpop.f32.mrb[0].mxu0
        %619 = vmatprep.mubr.f32.mxu0 0.0
        %v620 = vand.u32 %v412, 4294901760
        %621 = vmatmul.mubr.f32.gmra.mrb[0].mxu0 %v620
        %v622 = vpop.f32.mrb[0].mxu0
        %v623 = vadd.f32 %v506, %v622
        %v624 = vpop.f32.mrb[0].mxu0
        %625 = vmatprep.mubr.f32.mxu0 0.0
        %v626 = vand.u32 %v415, 4294901760
        %627 = vmatmul.mubr.f32.gmra.mrb[0].mxu0 %v626
        %v628 = vpop.f32.mrb[0].mxu0
        %v629 = vadd.f32 %v516, %v628
        %v630 = vpop.f32.mrb[0].mxu0
        %631 = vmatprep.mubr.f32.mxu0 0.0
        %v632 = vand.u32 %v418, 4294901760
        %633 = vmatmul.mubr.f32.gmra.mrb[0].mxu0 %v632
        %v634 = vpop.f32.mrb[0].mxu0
        %v635 = vadd.f32 %v526, %v634
        %v636 = vpop.f32.mrb[0].mxu0
        %637 = vdwg.mxu0
        %638 = vmatprep.subr.mxu0 0.0
        %v639 = vand.u32 %v377, 4294901760
        %v640 = vsub.f32 %v377, %v639
        %641 = vmatpush1.msra.mxu0 %v640
        %642 = vmatprep.subr.mxu0 0.0
        %v643 = vand.u32 %v380, 4294901760
        %v644 = vsub.f32 %v380, %v643
        %645 = vmatpush1.msra.mxu0 %v644
        %646 = vmatprep.subr.mxu0 0.0
        %v647 = vand.u32 %v383, 4294901760
        %v648 = vsub.f32 %v383, %v647
        %649 = vmatpush1.msra.mxu0 %v648
        %650 = vmatprep.subr.mxu0 0.0
        %v651 = vand.u32 %v386, 4294901760
        %v652 = vsub.f32 %v386, %v651
        %653 = vmatpush1.msra.mxu0 %v652
        %654 = vmatprep.subr.mxu0 0.0
        %655 = vmatpush1.msra.mxu0 0.0
        %656 = vmatprep.subr.mxu0 0.0
        %657 = vmatpush1.msra.mxu0 0.0
        %658 = vmatprep.subr.mxu0 0.0
        %659 = vmatpush1.msra.mxu0 0.0
        %660 = vmatprep.subr.mxu0 0.0
        %661 = vmatpush1.msra.mxu0 0.0
        %662 = vmatprep.subr.mxu0 0.0
        %663 = vmatpush1.msra.mxu0 0.0
        %664 = vmatprep.subr.mxu0 0.0
        %665 = vmatpush1.msra.mxu0 0.0
        %666 = vmatprep.subr.mxu0 0.0
        %667 = vmatpush1.msra.mxu0 0.0
        %668 = vmatprep.subr.mxu0 0.0
        %669 = vmatpush1.msra.mxu0 0.0
        %670 = vmatprep.subr.mxu0 0.0
        %671 = vmatpush1.msra.mxu0 0.0
        %672 = vmatprep.subr.mxu0 0.0
        %673 = vmatpush1.msra.mxu0 0.0
        %674 = vmatprep.subr.mxu0 0.0
        %675 = vmatpush1.msra.mxu0 0.0
        %676 = vmatprep.subr.mxu0 0.0
        %677 = vmatpush1.msra.mxu0 0.0
        %678 = vmatprep.subr.mxu0 0.0
        %679 = vmatpush1.msra.mxu0 0.0
        %680 = vmatprep.subr.mxu0 0.0
        %681 = vmatpush1.msra.mxu0 0.0
        %682 = vmatprep.subr.mxu0 0.0
        %683 = vmatpush1.msra.mxu0 0.0
        %684 = vmatprep.subr.mxu0 0.0
        %685 = vmatpush1.msra.mxu0 0.0
        %686 = vmatprep.subr.mxu0 0.0
        %687 = vmatpush1.msra.mxu0 0.0
        %688 = vmatprep.subr.mxu0 0.0
        %689 = vmatpush1.msra.mxu0 0.0
        %690 = vmatprep.subr.mxu0 0.0
        %691 = vmatpush1.msra.mxu0 0.0
        %692 = vmatprep.subr.mxu0 0.0
        %693 = vmatpush1.msra.mxu0 0.0
        %694 = vmatprep.subr.mxu0 0.0
        %695 = vmatpush1.msra.mxu0 0.0
        %696 = vmatprep.subr.mxu0 0.0
        %697 = vmatpush1.msra.mxu0 0.0
        %698 = vmatprep.subr.mxu0 0.0
        %699 = vmatpush1.msra.mxu0 0.0
        %700 = vmatprep.subr.mxu0 0.0
        %701 = vmatpush1.msra.mxu0 0.0
        %702 = vmatprep.subr.mxu0 0.0
        %703 = vmatpush1.msra.mxu0 0.0
        %704 = vmatprep.subr.mxu0 0.0
        %705 = vmatpush1.msra.mxu0 0.0
        %706 = vmatprep.subr.mxu0 0.0
        %707 = vmatpush1.msra.mxu0 0.0
        %708 = vmatprep.subr.mxu0 0.0
        %709 = vmatpush1.msra.mxu0 0.0
        %710 = vmatprep.mubr.f32.mxu0 0.0
        %v711 = vand.u32 %v409, 4294901760
        %v712 = vsub.f32 %v409, %v711
        %713 = vmatmul.mubr.f32.gmra.mrb[0].mxu0 %v712
        %v714 = vpop.f32.mrb[0].mxu0
        %v715 = vadd.f32 %v617, %v714
        %v716 = vpop.f32.mrb[0].mxu0
        %717 = vmatprep.mubr.f32.mxu0 0.0
        %v718 = vand.u32 %v412, 4294901760
        %v719 = vsub.f32 %v412, %v718
        %720 = vmatmul.mubr.f32.gmra.mrb[0].mxu0 %v719
        %v721 = vpop.f32.mrb[0].mxu0
        %v722 = vadd.f32 %v623, %v721
        %v723 = vpop.f32.mrb[0].mxu0
        %724 = vmatprep.mubr.f32.mxu0 0.0
        %v725 = vand.u32 %v415, 4294901760
        %v726 = vsub.f32 %v415, %v725
        %727 = vmatmul.mubr.f32.gmra.mrb[0].mxu0 %v726
        %v728 = vpop.f32.mrb[0].mxu0
        %v729 = vadd.f32 %v629, %v728
        %v730 = vpop.f32.mrb[0].mxu0
        %731 = vmatprep.mubr.f32.mxu0 0.0
        %v732 = vand.u32 %v418, 4294901760
        %v733 = vsub.f32 %v418, %v732
        %734 = vmatmul.mubr.f32.gmra.mrb[0].mxu0 %v733
        %v735 = vpop.f32.mrb[0].mxu0
        %v736 = vadd.f32 %v635, %v735
        %v737 = vpop.f32.mrb[0].mxu0
        %738 = vdwg.mxu0
        %739 = vmatprep.subr.mxu0 0.0
        %v740 = vand.u32 %v377, 4294901760
        %741 = vmatpush1.msra.mxu0 %v740
        %742 = vmatprep.subr.mxu0 0.0
        %v743 = vand.u32 %v380, 4294901760
        %744 = vmatpush1.msra.mxu0 %v743
        %745 = vmatprep.subr.mxu0 0.0
        %v746 = vand.u32 %v383, 4294901760
        %747 = vmatpush1.msra.mxu0 %v746
        %748 = vmatprep.subr.mxu0 0.0
        %v749 = vand.u32 %v386, 4294901760
        %750 = vmatpush1.msra.mxu0 %v749
        %751 = vmatprep.subr.mxu0 0.0
        %752 = vmatpush1.msra.mxu0 0.0
        %753 = vmatprep.subr.mxu0 0.0
        %754 = vmatpush1.msra.mxu0 0.0
        %755 = vmatprep.subr.mxu0 0.0
        %756 = vmatpush1.msra.mxu0 0.0
        %757 = vmatprep.subr.mxu0 0.0
        %758 = vmatpush1.msra.mxu0 0.0
        %759 = vmatprep.subr.mxu0 0.0
        %760 = vmatpush1.msra.mxu0 0.0
        %761 = vmatprep.subr.mxu0 0.0
        %762 = vmatpush1.msra.mxu0 0.0
        %763 = vmatprep.subr.mxu0 0.0
        %764 = vmatpush1.msra.mxu0 0.0
        %765 = vmatprep.subr.mxu0 0.0
        %766 = vmatpush1.msra.mxu0 0.0
        %767 = vmatprep.subr.mxu0 0.0
        %768 = vmatpush1.msra.mxu0 0.0
        %769 = vmatprep.subr.mxu0 0.0
        %770 = vmatpush1.msra.mxu0 0.0
        %771 = vmatprep.subr.mxu0 0.0
        %772 = vmatpush1.msra.mxu0 0.0
        %773 = vmatprep.subr.mxu0 0.0
        %774 = vmatpush1.msra.mxu0 0.0
        %775 = vmatprep.subr.mxu0 0.0
        %776 = vmatpush1.msra.mxu0 0.0
        %777 = vmatprep.subr.mxu0 0.0
        %778 = vmatpush1.msra.mxu0 0.0
        %779 = vmatprep.subr.mxu0 0.0
        %780 = vmatpush1.msra.mxu0 0.0
        %781 = vmatprep.subr.mxu0 0.0
        %782 = vmatpush1.msra.mxu0 0.0
        %783 = vmatprep.subr.mxu0 0.0
        %784 = vmatpush1.msra.mxu0 0.0
        %785 = vmatprep.subr.mxu0 0.0
        %786 = vmatpush1.msra.mxu0 0.0
        %787 = vmatprep.subr.mxu0 0.0
        %788 = vmatpush1.msra.mxu0 0.0
        %789 = vmatprep.subr.mxu0 0.0
        %790 = vmatpush1.msra.mxu0 0.0
        %791 = vmatprep.subr.mxu0 0.0
        %792 = vmatpush1.msra.mxu0 0.0
        %793 = vmatprep.subr.mxu0 0.0
        %794 = vmatpush1.msra.mxu0 0.0
        %795 = vmatprep.subr.mxu0 0.0
        %796 = vmatpush1.msra.mxu0 0.0
        %797 = vmatprep.subr.mxu0 0.0
        %798 = vmatpush1.msra.mxu0 0.0
        %799 = vmatprep.subr.mxu0 0.0
        %800 = vmatpush1.msra.mxu0 0.0
        %801 = vmatprep.subr.mxu0 0.0
        %802 = vmatpush1.msra.mxu0 0.0
        %803 = vmatprep.subr.mxu0 0.0
        %804 = vmatpush1.msra.mxu0 0.0
        %805 = vmatprep.subr.mxu0 0.0
        %806 = vmatpush1.msra.mxu0 0.0
        %807 = vmatprep.mubr.f32.mxu0 0.0
        %v808 = vand.u32 %v409, 4294901760
        %v809 = vsub.f32 %v409, %v808
        %v810 = vand.u32 %v809, 4294901760
        %811 = vmatmul.mubr.f32.gmra.mrb[0].mxu0 %v810
        %v812 = vpop.f32.mrb[0].mxu0
        %v813 = vadd.f32 %v715, %v812
        %v814 = vpop.f32.mrb[0].mxu0
        %815 = vmatprep.mubr.f32.mxu0 0.0
        %v816 = vand.u32 %v412, 4294901760
        %v817 = vsub.f32 %v412, %v816
        %v818 = vand.u32 %v817, 4294901760
        %819 = vmatmul.mubr.f32.gmra.mrb[0].mxu0 %v818
        %v820 = vpop.f32.mrb[0].mxu0
        %v821 = vadd.f32 %v722, %v820
        %v822 = vpop.f32.mrb[0].mxu0
        %823 = vmatprep.mubr.f32.mxu0 0.0
        %v824 = vand.u32 %v415, 4294901760
        %v825 = vsub.f32 %v415, %v824
        %v826 = vand.u32 %v825, 4294901760
        %827 = vmatmul.mubr.f32.gmra.mrb[0].mxu0 %v826
        %v828 = vpop.f32.mrb[0].mxu0
        %v829 = vadd.f32 %v729, %v828
        %v830 = vpop.f32.mrb[0].mxu0
        %831 = vmatprep.mubr.f32.mxu0 0.0
        %v832 = vand.u32 %v418, 4294901760
        %v833 = vsub.f32 %v418, %v832
        %v834 = vand.u32 %v833, 4294901760
        %835 = vmatmul.mubr.f32.gmra.mrb[0].mxu0 %v834
        %v836 = vpop.f32.mrb[0].mxu0
        %v837 = vadd.f32 %v736, %v836
        %v838 = vpop.f32.mrb[0].mxu0
        %839 = vdwg.mxu0
        %840 = vmatprep.subr.mxu0 0.0
        %v841 = vand.u32 %v377, 4294901760
        %v842 = vsub.f32 %v377, %v841
        %v843 = vand.u32 %v842, 4294901760
        %844 = vmatpush1.msra.mxu0 %v843
        %845 = vmatprep.subr.mxu0 0.0
        %v846 = vand.u32 %v380, 4294901760
        %v847 = vsub.f32 %v380, %v846
        %v848 = vand.u32 %v847, 4294901760
        %849 = vmatpush1.msra.mxu0 %v848
        %850 = vmatprep.subr.mxu0 0.0
        %v851 = vand.u32 %v383, 4294901760
        %v852 = vsub.f32 %v383, %v851
        %v853 = vand.u32 %v852, 4294901760
        %854 = vmatpush1.msra.mxu0 %v853
        %855 = vmatprep.subr.mxu0 0.0
        %v856 = vand.u32 %v386, 4294901760
        %v857 = vsub.f32 %v386, %v856
        %v858 = vand.u32 %v857, 4294901760
        %859 = vmatpush1.msra.mxu0 %v858
        %860 = vmatprep.subr.mxu0 0.0
        %861 = vmatpush1.msra.mxu0 0.0
        %862 = vmatprep.subr.mxu0 0.0
        %863 = vmatpush1.msra.mxu0 0.0
        %864 = vmatprep.subr.mxu0 0.0
        %865 = vmatpush1.msra.mxu0 0.0
        %866 = vmatprep.subr.mxu0 0.0
        %867 = vmatpush1.msra.mxu0 0.0
        %868 = vmatprep.subr.mxu0 0.0
        %869 = vmatpush1.msra.mxu0 0.0
        %870 = vmatprep.subr.mxu0 0.0
        %871 = vmatpush1.msra.mxu0 0.0
        %872 = vmatprep.subr.mxu0 0.0
        %873 = vmatpush1.msra.mxu0 0.0
        %874 = vmatprep.subr.mxu0 0.0
        %875 = vmatpush1.msra.mxu0 0.0
        %876 = vmatprep.subr.mxu0 0.0
        %877 = vmatpush1.msra.mxu0 0.0
        %878 = vmatprep.subr.mxu0 0.0
        %879 = vmatpush1.msra.mxu0 0.0
        %880 = vmatprep.subr.mxu0 0.0
        %881 = vmatpush1.msra.mxu0 0.0
        %882 = vmatprep.subr.mxu0 0.0
        %883 = vmatpush1.msra.mxu0 0.0
        %884 = vmatprep.subr.mxu0 0.0
        %885 = vmatpush1.msra.mxu0 0.0
        %886 = vmatprep.subr.mxu0 0.0
        %887 = vmatpush1.msra.mxu0 0.0
        %888 = vmatprep.subr.mxu0 0.0
        %889 = vmatpush1.msra.mxu0 0.0
        %890 = vmatprep.subr.mxu0 0.0
        %891 = vmatpush1.msra.mxu0 0.0
        %892 = vmatprep.subr.mxu0 0.0
        %893 = vmatpush1.msra.mxu0 0.0
        %894 = vmatprep.subr.mxu0 0.0
        %895 = vmatpush1.msra.mxu0 0.0
        %896 = vmatprep.subr.mxu0 0.0
        %897 = vmatpush1.msra.mxu0 0.0
        %898 = vmatprep.subr.mxu0 0.0
        %899 = vmatpush1.msra.mxu0 0.0
        %900 = vmatprep.subr.mxu0 0.0
        %901 = vmatpush1.msra.mxu0 0.0
        %902 = vmatprep.subr.mxu0 0.0
        %903 = vmatpush1.msra.mxu0 0.0
        %904 = vmatprep.subr.mxu0 0.0
        %905 = vmatpush1.msra.mxu0 0.0
        %906 = vmatprep.subr.mxu0 0.0
        %907 = vmatpush1.msra.mxu0 0.0
        %908 = vmatprep.subr.mxu0 0.0
        %909 = vmatpush1.msra.mxu0 0.0
        %910 = vmatprep.subr.mxu0 0.0
        %911 = vmatpush1.msra.mxu0 0.0
        %912 = vmatprep.subr.mxu0 0.0
        %913 = vmatpush1.msra.mxu0 0.0
        %914 = vmatprep.subr.mxu0 0.0
        %915 = vmatpush1.msra.mxu0 0.0
        %916 = vmatprep.mubr.f32.mxu0 0.0
        %v917 = vand.u32 %v409, 4294901760
        %918 = vmatmul.mubr.f32.gmra.mrb[0].mxu0 %v917
        %v919 = vpop.f32.mrb[0].mxu0
        %v920 = vadd.f32 %v813, %v919
        %v921 = vpop.f32.mrb[0].mxu0
        %922 = vmatprep.mubr.f32.mxu0 0.0
        %v923 = vand.u32 %v412, 4294901760
        %924 = vmatmul.mubr.f32.gmra.mrb[0].mxu0 %v923
        %v925 = vpop.f32.mrb[0].mxu0
        %v926 = vadd.f32 %v821, %v925
        %v927 = vpop.f32.mrb[0].mxu0
        %928 = vmatprep.mubr.f32.mxu0 0.0
        %v929 = vand.u32 %v415, 4294901760
        %930 = vmatmul.mubr.f32.gmra.mrb[0].mxu0 %v929
        %v931 = vpop.f32.mrb[0].mxu0
        %v932 = vadd.f32 %v829, %v931
        %v933 = vpop.f32.mrb[0].mxu0
        %934 = vmatprep.mubr.f32.mxu0 0.0
        %v935 = vand.u32 %v418, 4294901760
        %936 = vmatmul.mubr.f32.gmra.mrb[0].mxu0 %v935
        %v937 = vpop.f32.mrb[0].mxu0
        %v938 = vadd.f32 %v837, %v937
        %v939 = vpop.f32.mrb[0].mxu0
        %940 = vdwg.mxu0
        %941 = vmatprep.subr.mxu0 0.0
        %v942 = vand.u32 %v377, 4294901760
        %943 = vmatpush1.msra.mxu0 %v942
        %944 = vmatprep.subr.mxu0 0.0
        %v945 = vand.u32 %v380, 4294901760
        %946 = vmatpush1.msra.mxu0 %v945
        %947 = vmatprep.subr.mxu0 0.0
        %v948 = vand.u32 %v383, 4294901760
        %949 = vmatpush1.msra.mxu0 %v948
        %950 = vmatprep.subr.mxu0 0.0
        %v951 = vand.u32 %v386, 4294901760
        %952 = vmatpush1.msra.mxu0 %v951
        %953 = vmatprep.subr.mxu0 0.0
        %954 = vmatpush1.msra.mxu0 0.0
        %955 = vmatprep.subr.mxu0 0.0
        %956 = vmatpush1.msra.mxu0 0.0
        %957 = vmatprep.subr.mxu0 0.0
        %958 = vmatpush1.msra.mxu0 0.0
        %959 = vmatprep.subr.mxu0 0.0
        %960 = vmatpush1.msra.mxu0 0.0
        %961 = vmatprep.subr.mxu0 0.0
        %962 = vmatpush1.msra.mxu0 0.0
        %963 = vmatprep.subr.mxu0 0.0
        %964 = vmatpush1.msra.mxu0 0.0
        %965 = vmatprep.subr.mxu0 0.0
        %966 = vmatpush1.msra.mxu0 0.0
        %967 = vmatprep.subr.mxu0 0.0
        %968 = vmatpush1.msra.mxu0 0.0
        %969 = vmatprep.subr.mxu0 0.0
        %970 = vmatpush1.msra.mxu0 0.0
        %971 = vmatprep.subr.mxu0 0.0
        %972 = vmatpush1.msra.mxu0 0.0
        %973 = vmatprep.subr.mxu0 0.0
        %974 = vmatpush1.msra.mxu0 0.0
        %975 = vmatprep.subr.mxu0 0.0
        %976 = vmatpush1.msra.mxu0 0.0
        %977 = vmatprep.subr.mxu0 0.0
        %978 = vmatpush1.msra.mxu0 0.0
        %979 = vmatprep.subr.mxu0 0.0
        %980 = vmatpush1.msra.mxu0 0.0
        %981 = vmatprep.subr.mxu0 0.0
        %982 = vmatpush1.msra.mxu0 0.0
        %983 = vmatprep.subr.mxu0 0.0
        %984 = vmatpush1.msra.mxu0 0.0
        %985 = vmatprep.subr.mxu0 0.0
        %986 = vmatpush1.msra.mxu0 0.0
        %987 = vmatprep.subr.mxu0 0.0
        %988 = vmatpush1.msra.mxu0 0.0
        %989 = vmatprep.subr.mxu0 0.0
        %990 = vmatpush1.msra.mxu0 0.0
        %991 = vmatprep.subr.mxu0 0.0
        %992 = vmatpush1.msra.mxu0 0.0
        %993 = vmatprep.subr.mxu0 0.0
        %994 = vmatpush1.msra.mxu0 0.0
        %995 = vmatprep.subr.mxu0 0.0
        %996 = vmatpush1.msra.mxu0 0.0
        %997 = vmatprep.subr.mxu0 0.0
        %998 = vmatpush1.msra.mxu0 0.0
        %999 = vmatprep.subr.mxu0 0.0
        %1000 = vmatpush1.msra.mxu0 0.0
        %1001 = vmatprep.subr.mxu0 0.0
        %1002 = vmatpush1.msra.mxu0 0.0
        %1003 = vmatprep.subr.mxu0 0.0
        %1004 = vmatpush1.msra.mxu0 0.0
        %1005 = vmatprep.subr.mxu0 0.0
        %1006 = vmatpush1.msra.mxu0 0.0
        %1007 = vmatprep.subr.mxu0 0.0
        %1008 = vmatpush1.msra.mxu0 0.0
        %1009 = vmatprep.mubr.f32.mxu0 0.0
        %v1010 = vand.u32 %v409, 4294901760
        %1011 = vmatmul.mubr.f32.gmra.mrb[0].mxu0 %v1010
        %v1012 = vpop.f32.mrb[0].mxu0
        %v1013 = vadd.f32 %v920, %v1012
        %v1014 = vpop.f32.mrb[0].mxu0
        %1015 = vmatprep.mubr.f32.mxu0 0.0
        %v1016 = vand.u32 %v412, 4294901760
        %1017 = vmatmul.mubr.f32.gmra.mrb[0].mxu0 %v1016
        %v1018 = vpop.f32.mrb[0].mxu0
        %v1019 = vadd.f32 %v926, %v1018
        %v1020 = vpop.f32.mrb[0].mxu0
        %1021 = vmatprep.mubr.f32.mxu0 0.0
        %v1022 = vand.u32 %v415, 4294901760
        %1023 = vmatmul.mubr.f32.gmra.mrb[0].mxu0 %v1022
        %v1024 = vpop.f32.mrb[0].mxu0
        %v1025 = vadd.f32 %v932, %v1024
        %v1026 = vpop.f32.mrb[0].mxu0
        %1027 = vmatprep.mubr.f32.mxu0 0.0
        %v1028 = vand.u32 %v418, 4294901760
        %1029 = vmatmul.mubr.f32.gmra.mrb[0].mxu0 %v1028
        %v1030 = vpop.f32.mrb[0].mxu0
        %v1031 = vadd.f32 %v938, %v1030
        %v1032 = vpop.f32.mrb[0].mxu0
        %1033 = vdwg.mxu0
        %1034 = vmatprep.subr.mxu0 0.0
        %v1035 = vand.u32 %v397, 4294901760
        %1036 = vmatpush1.msra.mxu0 %v1035
        %1037 = vmatprep.subr.mxu0 0.0
        %v1038 = vand.u32 %v400, 4294901760
        %1039 = vmatpush1.msra.mxu0 %v1038
        %1040 = vmatprep.subr.mxu0 0.0
        %v1041 = vand.u32 %v403, 4294901760
        %1042 = vmatpush1.msra.mxu0 %v1041
        %1043 = vmatprep.subr.mxu0 0.0
        %v1044 = vand.u32 %v406, 4294901760
        %1045 = vmatpush1.msra.mxu0 %v1044
        %1046 = vmatprep.subr.mxu0 0.0
        %1047 = vmatpush1.msra.mxu0 0.0
        %1048 = vmatprep.subr.mxu0 0.0
        %1049 = vmatpush1.msra.mxu0 0.0
        %1050 = vmatprep.subr.mxu0 0.0
        %1051 = vmatpush1.msra.mxu0 0.0
        %1052 = vmatprep.subr.mxu0 0.0
        %1053 = vmatpush1.msra.mxu0 0.0
        %1054 = vmatprep.subr.mxu0 0.0
        %1055 = vmatpush1.msra.mxu0 0.0
        %1056 = vmatprep.subr.mxu0 0.0
        %1057 = vmatpush1.msra.mxu0 0.0
        %1058 = vmatprep.subr.mxu0 0.0
        %1059 = vmatpush1.msra.mxu0 0.0
        %1060 = vmatprep.subr.mxu0 0.0
        %1061 = vmatpush1.msra.mxu0 0.0
        %1062 = vmatprep.subr.mxu0 0.0
        %1063 = vmatpush1.msra.mxu0 0.0
        %1064 = vmatprep.subr.mxu0 0.0
        %1065 = vmatpush1.msra.mxu0 0.0
        %1066 = vmatprep.subr.mxu0 0.0
        %1067 = vmatpush1.msra.mxu0 0.0
        %1068 = vmatprep.subr.mxu0 0.0
        %1069 = vmatpush1.msra.mxu0 0.0
        %1070 = vmatprep.subr.mxu0 0.0
        %1071 = vmatpush1.msra.mxu0 0.0
        %1072 = vmatprep.subr.mxu0 0.0
        %1073 = vmatpush1.msra.mxu0 0.0
        %1074 = vmatprep.subr.mxu0 0.0
        %1075 = vmatpush1.msra.mxu0 0.0
        %1076 = vmatprep.subr.mxu0 0.0
        %1077 = vmatpush1.msra.mxu0 0.0
        %1078 = vmatprep.subr.mxu0 0.0
        %1079 = vmatpush1.msra.mxu0 0.0
        %1080 = vmatprep.subr.mxu0 0.0
        %1081 = vmatpush1.msra.mxu0 0.0
        %1082 = vmatprep.subr.mxu0 0.0
        %1083 = vmatpush1.msra.mxu0 0.0
        %1084 = vmatprep.subr.mxu0 0.0
        %1085 = vmatpush1.msra.mxu0 0.0
        %1086 = vmatprep.subr.mxu0 0.0
        %1087 = vmatpush1.msra.mxu0 0.0
        %1088 = vmatprep.subr.mxu0 0.0
        %1089 = vmatpush1.msra.mxu0 0.0
        %1090 = vmatprep.subr.mxu0 0.0
        %1091 = vmatpush1.msra.mxu0 0.0
        %1092 = vmatprep.subr.mxu0 0.0
        %1093 = vmatpush1.msra.mxu0 0.0
        %1094 = vmatprep.subr.mxu0 0.0
        %1095 = vmatpush1.msra.mxu0 0.0
        %1096 = vmatprep.subr.mxu0 0.0
        %1097 = vmatpush1.msra.mxu0 0.0
        %1098 = vmatprep.subr.mxu0 0.0
        %1099 = vmatpush1.msra.mxu0 0.0
        %1100 = vmatprep.subr.mxu0 0.0
        %1101 = vmatpush1.msra.mxu0 0.0
        %1102 = vmatprep.mubr.f32.mxu0 0.0
        %v1103 = vand.u32 %v409, 4294901760
        %v1104 = vsub.f32 %v409, %v1103
        %v1105 = vand.u32 %v1104, 4294901760
        %v1106 = vsub.f32 %v1104, %v1105
        %v1107 = vand.u32 %v1106, 4294901760
        %1108 = vmatmul.mubr.f32.gmra.mrb[0].mxu0 %v1107
        %v1109 = vpop.f32.mrb[0].mxu0
        %v1110 = vadd.f32 0.0, %v1109
        %v1111 = vpop.f32.mrb[0].mxu0
        %1112 = vmatprep.mubr.f32.mxu0 0.0
        %v1113 = vand.u32 %v412, 4294901760
        %v1114 = vsub.f32 %v412, %v1113
        %v1115 = vand.u32 %v1114, 4294901760
        %v1116 = vsub.f32 %v1114, %v1115
        %v1117 = vand.u32 %v1116, 4294901760
        %1118 = vmatmul.mubr.f32.gmra.mrb[0].mxu0 %v1117
        %v1119 = vpop.f32.mrb[0].mxu0
        %v1120 = vadd.f32 0.0, %v1119
        %v1121 = vpop.f32.mrb[0].mxu0
        %1122 = vmatprep.mubr.f32.mxu0 0.0
        %v1123 = vand.u32 %v415, 4294901760
        %v1124 = vsub.f32 %v415, %v1123
        %v1125 = vand.u32 %v1124, 4294901760
        %v1126 = vsub.f32 %v1124, %v1125
        %v1127 = vand.u32 %v1126, 4294901760
        %1128 = vmatmul.mubr.f32.gmra.mrb[0].mxu0 %v1127
        %v1129 = vpop.f32.mrb[0].mxu0
        %v1130 = vadd.f32 0.0, %v1129
        %v1131 = vpop.f32.mrb[0].mxu0
        %1132 = vmatprep.mubr.f32.mxu0 0.0
        %v1133 = vand.u32 %v418, 4294901760
        %v1134 = vsub.f32 %v418, %v1133
        %v1135 = vand.u32 %v1134, 4294901760
        %v1136 = vsub.f32 %v1134, %v1135
        %v1137 = vand.u32 %v1136, 4294901760
        %1138 = vmatmul.mubr.f32.gmra.mrb[0].mxu0 %v1137
        %v1139 = vpop.f32.mrb[0].mxu0
        %v1140 = vadd.f32 0.0, %v1139
        %v1141 = vpop.f32.mrb[0].mxu0
        %1142 = vdwg.mxu0
        %1143 = vmatprep.subr.mxu0 0.0
        %v1144 = vand.u32 %v397, 4294901760
        %v1145 = vsub.f32 %v397, %v1144
        %v1146 = vand.u32 %v1145, 4294901760
        %v1147 = vsub.f32 %v1145, %v1146
        %v1148 = vand.u32 %v1147, 4294901760
        %1149 = vmatpush1.msra.mxu0 %v1148
        %1150 = vmatprep.subr.mxu0 0.0
        %v1151 = vand.u32 %v400, 4294901760
        %v1152 = vsub.f32 %v400, %v1151
        %v1153 = vand.u32 %v1152, 4294901760
        %v1154 = vsub.f32 %v1152, %v1153
        %v1155 = vand.u32 %v1154, 4294901760
        %1156 = vmatpush1.msra.mxu0 %v1155
        %1157 = vmatprep.subr.mxu0 0.0
        %v1158 = vand.u32 %v403, 4294901760
        %v1159 = vsub.f32 %v403, %v1158
        %v1160 = vand.u32 %v1159, 4294901760
        %v1161 = vsub.f32 %v1159, %v1160
        %v1162 = vand.u32 %v1161, 4294901760
        %1163 = vmatpush1.msra.mxu0 %v1162
        %1164 = vmatprep.subr.mxu0 0.0
        %v1165 = vand.u32 %v406, 4294901760
        %v1166 = vsub.f32 %v406, %v1165
        %v1167 = vand.u32 %v1166, 4294901760
        %v1168 = vsub.f32 %v1166, %v1167
        %v1169 = vand.u32 %v1168, 4294901760
        %1170 = vmatpush1.msra.mxu0 %v1169
        %1171 = vmatprep.subr.mxu0 0.0
        %1172 = vmatpush1.msra.mxu0 0.0
        %1173 = vmatprep.subr.mxu0 0.0
        %1174 = vmatpush1.msra.mxu0 0.0
        %1175 = vmatprep.subr.mxu0 0.0
        %1176 = vmatpush1.msra.mxu0 0.0
        %1177 = vmatprep.subr.mxu0 0.0
        %1178 = vmatpush1.msra.mxu0 0.0
        %1179 = vmatprep.subr.mxu0 0.0
        %1180 = vmatpush1.msra.mxu0 0.0
        %1181 = vmatprep.subr.mxu0 0.0
        %1182 = vmatpush1.msra.mxu0 0.0
        %1183 = vmatprep.subr.mxu0 0.0
        %1184 = vmatpush1.msra.mxu0 0.0
        %1185 = vmatprep.subr.mxu0 0.0
        %1186 = vmatpush1.msra.mxu0 0.0
        %1187 = vmatprep.subr.mxu0 0.0
        %1188 = vmatpush1.msra.mxu0 0.0
        %1189 = vmatprep.subr.mxu0 0.0
        %1190 = vmatpush1.msra.mxu0 0.0
        %1191 = vmatprep.subr.mxu0 0.0
        %1192 = vmatpush1.msra.mxu0 0.0
        %1193 = vmatprep.subr.mxu0 0.0
        %1194 = vmatpush1.msra.mxu0 0.0
        %1195 = vmatprep.subr.mxu0 0.0
        %1196 = vmatpush1.msra.mxu0 0.0
        %1197 = vmatprep.subr.mxu0 0.0
        %1198 = vmatpush1.msra.mxu0 0.0
        %1199 = vmatprep.subr.mxu0 0.0
        %1200 = vmatpush1.msra.mxu0 0.0
        %1201 = vmatprep.subr.mxu0 0.0
        %1202 = vmatpush1.msra.mxu0 0.0
        %1203 = vmatprep.subr.mxu0 0.0
        %1204 = vmatpush1.msra.mxu0 0.0
        %1205 = vmatprep.subr.mxu0 0.0
        %1206 = vmatpush1.msra.mxu0 0.0
        %1207 = vmatprep.subr.mxu0 0.0
        %1208 = vmatpush1.msra.mxu0 0.0
        %1209 = vmatprep.subr.mxu0 0.0
        %1210 = vmatpush1.msra.mxu0 0.0
        %1211 = vmatprep.subr.mxu0 0.0
        %1212 = vmatpush1.msra.mxu0 0.0
        %1213 = vmatprep.subr.mxu0 0.0
        %1214 = vmatpush1.msra.mxu0 0.0
        %1215 = vmatprep.subr.mxu0 0.0
        %1216 = vmatpush1.msra.mxu0 0.0
        %1217 = vmatprep.subr.mxu0 0.0
        %1218 = vmatpush1.msra.mxu0 0.0
        %1219 = vmatprep.subr.mxu0 0.0
        %1220 = vmatpush1.msra.mxu0 0.0
        %1221 = vmatprep.subr.mxu0 0.0
        %1222 = vmatpush1.msra.mxu0 0.0
        %1223 = vmatprep.subr.mxu0 0.0
        %1224 = vmatpush1.msra.mxu0 0.0
        %1225 = vmatprep.subr.mxu0 0.0
        %1226 = vmatpush1.msra.mxu0 0.0
        %1227 = vmatprep.mubr.f32.mxu0 0.0
        %v1228 = vand.u32 %v409, 4294901760
        %1229 = vmatmul.mubr.f32.gmra.mrb[0].mxu0 %v1228
        %v1230 = vpop.f32.mrb[0].mxu0
        %v1231 = vadd.f32 %v1110, %v1230
        %v1232 = vpop.f32.mrb[0].mxu0
        %1233 = vmatprep.mubr.f32.mxu0 0.0
        %v1234 = vand.u32 %v412, 4294901760
        %1235 = vmatmul.mubr.f32.gmra.mrb[0].mxu0 %v1234
        %v1236 = vpop.f32.mrb[0].mxu0
        %v1237 = vadd.f32 %v1120, %v1236
        %v1238 = vpop.f32.mrb[0].mxu0
        %1239 = vmatprep.mubr.f32.mxu0 0.0
        %v1240 = vand.u32 %v415, 4294901760
        %1241 = vmatmul.mubr.f32.gmra.mrb[0].mxu0 %v1240
        %v1242 = vpop.f32.mrb[0].mxu0
        %v1243 = vadd.f32 %v1130, %v1242
        %v1244 = vpop.f32.mrb[0].mxu0
        %1245 = vmatprep.mubr.f32.mxu0 0.0
        %v1246 = vand.u32 %v418, 4294901760
        %1247 = vmatmul.mubr.f32.gmra.mrb[0].mxu0 %v1246
        %v1248 = vpop.f32.mrb[0].mxu0
        %v1249 = vadd.f32 %v1140, %v1248
        %v1250 = vpop.f32.mrb[0].mxu0
        %1251 = vdwg.mxu0
        %1252 = vmatprep.subr.mxu0 0.0
        %v1253 = vand.u32 %v397, 4294901760
        %v1254 = vsub.f32 %v397, %v1253
        %1255 = vmatpush1.msra.mxu0 %v1254
        %1256 = vmatprep.subr.mxu0 0.0
        %v1257 = vand.u32 %v400, 4294901760
        %v1258 = vsub.f32 %v400, %v1257
        %1259 = vmatpush1.msra.mxu0 %v1258
        %1260 = vmatprep.subr.mxu0 0.0
        %v1261 = vand.u32 %v403, 4294901760
        %v1262 = vsub.f32 %v403, %v1261
        %1263 = vmatpush1.msra.mxu0 %v1262
        %1264 = vmatprep.subr.mxu0 0.0
        %v1265 = vand.u32 %v406, 4294901760
        %v1266 = vsub.f32 %v406, %v1265
        %1267 = vmatpush1.msra.mxu0 %v1266
        %1268 = vmatprep.subr.mxu0 0.0
        %1269 = vmatpush1.msra.mxu0 0.0
        %1270 = vmatprep.subr.mxu0 0.0
        %1271 = vmatpush1.msra.mxu0 0.0
        %1272 = vmatprep.subr.mxu0 0.0
        %1273 = vmatpush1.msra.mxu0 0.0
        %1274 = vmatprep.subr.mxu0 0.0
        %1275 = vmatpush1.msra.mxu0 0.0
        %1276 = vmatprep.subr.mxu0 0.0
        %1277 = vmatpush1.msra.mxu0 0.0
        %1278 = vmatprep.subr.mxu0 0.0
        %1279 = vmatpush1.msra.mxu0 0.0
        %1280 = vmatprep.subr.mxu0 0.0
        %1281 = vmatpush1.msra.mxu0 0.0
        %1282 = vmatprep.subr.mxu0 0.0
        %1283 = vmatpush1.msra.mxu0 0.0
        %1284 = vmatprep.subr.mxu0 0.0
        %1285 = vmatpush1.msra.mxu0 0.0
        %1286 = vmatprep.subr.mxu0 0.0
        %1287 = vmatpush1.msra.mxu0 0.0
        %1288 = vmatprep.subr.mxu0 0.0
        %1289 = vmatpush1.msra.mxu0 0.0
        %1290 = vmatprep.subr.mxu0 0.0
        %1291 = vmatpush1.msra.mxu0 0.0
        %1292 = vmatprep.subr.mxu0 0.0
        %1293 = vmatpush1.msra.mxu0 0.0
        %1294 = vmatprep.subr.mxu0 0.0
        %1295 = vmatpush1.msra.mxu0 0.0
        %1296 = vmatprep.subr.mxu0 0.0
        %1297 = vmatpush1.msra.mxu0 0.0
        %1298 = vmatprep.subr.mxu0 0.0
        %1299 = vmatpush1.msra.mxu0 0.0
        %1300 = vmatprep.subr.mxu0 0.0
        %1301 = vmatpush1.msra.mxu0 0.0
        %1302 = vmatprep.subr.mxu0 0.0
        %1303 = vmatpush1.msra.mxu0 0.0
        %1304 = vmatprep.subr.mxu0 0.0
        %1305 = vmatpush1.msra.mxu0 0.0
        %1306 = vmatprep.subr.mxu0 0.0
        %1307 = vmatpush1.msra.mxu0 0.0
        %1308 = vmatprep.subr.mxu0 0.0
        %1309 = vmatpush1.msra.mxu0 0.0
        %1310 = vmatprep.subr.mxu0 0.0
        %1311 = vmatpush1.msra.mxu0 0.0
        %1312 = vmatprep.subr.mxu0 0.0
        %1313 = vmatpush1.msra.mxu0 0.0
        %1314 = vmatprep.subr.mxu0 0.0
        %1315 = vmatpush1.msra.mxu0 0.0
        %1316 = vmatprep.subr.mxu0 0.0
        %1317 = vmatpush1.msra.mxu0 0.0
        %1318 = vmatprep.subr.mxu0 0.0
        %1319 = vmatpush1.msra.mxu0 0.0
        %1320 = vmatprep.subr.mxu0 0.0
        %1321 = vmatpush1.msra.mxu0 0.0
        %1322 = vmatprep.subr.mxu0 0.0
        %1323 = vmatpush1.msra.mxu0 0.0
        %1324 = vmatprep.mubr.f32.mxu0 0.0
        %v1325 = vand.u32 %v409, 4294901760
        %v1326 = vsub.f32 %v409, %v1325
        %1327 = vmatmul.mubr.f32.gmra.mrb[0].mxu0 %v1326
        %v1328 = vpop.f32.mrb[0].mxu0
        %v1329 = vadd.f32 %v1231, %v1328
        %v1330 = vpop.f32.mrb[0].mxu0
        %1331 = vmatprep.mubr.f32.mxu0 0.0
        %v1332 = vand.u32 %v412, 4294901760
        %v1333 = vsub.f32 %v412, %v1332
        %1334 = vmatmul.mubr.f32.gmra.mrb[0].mxu0 %v1333
        %v1335 = vpop.f32.mrb[0].mxu0
        %v1336 = vadd.f32 %v1237, %v1335
        %v1337 = vpop.f32.mrb[0].mxu0
        %1338 = vmatprep.mubr.f32.mxu0 0.0
        %v1339 = vand.u32 %v415, 4294901760
        %v1340 = vsub.f32 %v415, %v1339
        %1341 = vmatmul.mubr.f32.gmra.mrb[0].mxu0 %v1340
        %v1342 = vpop.f32.mrb[0].mxu0
        %v1343 = vadd.f32 %v1243, %v1342
        %v1344 = vpop.f32.mrb[0].mxu0
        %1345 = vmatprep.mubr.f32.mxu0 0.0
        %v1346 = vand.u32 %v418, 4294901760
        %v1347 = vsub.f32 %v418, %v1346
        %1348 = vmatmul.mubr.f32.gmra.mrb[0].mxu0 %v1347
        %v1349 = vpop.f32.mrb[0].mxu0
        %v1350 = vadd.f32 %v1249, %v1349
        %v1351 = vpop.f32.mrb[0].mxu0
        %1352 = vdwg.mxu0
        %1353 = vmatprep.subr.mxu0 0.0
        %v1354 = vand.u32 %v397, 4294901760
        %1355 = vmatpush1.msra.mxu0 %v1354
        %1356 = vmatprep.subr.mxu0 0.0
        %v1357 = vand.u32 %v400, 4294901760
        %1358 = vmatpush1.msra.mxu0 %v1357
        %1359 = vmatprep.subr.mxu0 0.0
        %v1360 = vand.u32 %v403, 4294901760
        %1361 = vmatpush1.msra.mxu0 %v1360
        %1362 = vmatprep.subr.mxu0 0.0
        %v1363 = vand.u32 %v406, 4294901760
        %1364 = vmatpush1.msra.mxu0 %v1363
        %1365 = vmatprep.subr.mxu0 0.0
        %1366 = vmatpush1.msra.mxu0 0.0
        %1367 = vmatprep.subr.mxu0 0.0
        %1368 = vmatpush1.msra.mxu0 0.0
        %1369 = vmatprep.subr.mxu0 0.0
        %1370 = vmatpush1.msra.mxu0 0.0
        %1371 = vmatprep.subr.mxu0 0.0
        %1372 = vmatpush1.msra.mxu0 0.0
        %1373 = vmatprep.subr.mxu0 0.0
        %1374 = vmatpush1.msra.mxu0 0.0
        %1375 = vmatprep.subr.mxu0 0.0
        %1376 = vmatpush1.msra.mxu0 0.0
        %1377 = vmatprep.subr.mxu0 0.0
        %1378 = vmatpush1.msra.mxu0 0.0
        %1379 = vmatprep.subr.mxu0 0.0
        %1380 = vmatpush1.msra.mxu0 0.0
        %1381 = vmatprep.subr.mxu0 0.0
        %1382 = vmatpush1.msra.mxu0 0.0
        %1383 = vmatprep.subr.mxu0 0.0
        %1384 = vmatpush1.msra.mxu0 0.0
        %1385 = vmatprep.subr.mxu0 0.0
        %1386 = vmatpush1.msra.mxu0 0.0
        %1387 = vmatprep.subr.mxu0 0.0
        %1388 = vmatpush1.msra.mxu0 0.0
        %1389 = vmatprep.subr.mxu0 0.0
        %1390 = vmatpush1.msra.mxu0 0.0
        %1391 = vmatprep.subr.mxu0 0.0
        %1392 = vmatpush1.msra.mxu0 0.0
        %1393 = vmatprep.subr.mxu0 0.0
        %1394 = vmatpush1.msra.mxu0 0.0
        %1395 = vmatprep.subr.mxu0 0.0
        %1396 = vmatpush1.msra.mxu0 0.0
        %1397 = vmatprep.subr.mxu0 0.0
        %1398 = vmatpush1.msra.mxu0 0.0
        %1399 = vmatprep.subr.mxu0 0.0
        %1400 = vmatpush1.msra.mxu0 0.0
        %1401 = vmatprep.subr.mxu0 0.0
        %1402 = vmatpush1.msra.mxu0 0.0
        %1403 = vmatprep.subr.mxu0 0.0
        %1404 = vmatpush1.msra.mxu0 0.0
        %1405 = vmatprep.subr.mxu0 0.0
        %1406 = vmatpush1.msra.mxu0 0.0
        %1407 = vmatprep.subr.mxu0 0.0
        %1408 = vmatpush1.msra.mxu0 0.0
        %1409 = vmatprep.subr.mxu0 0.0
        %1410 = vmatpush1.msra.mxu0 0.0
        %1411 = vmatprep.subr.mxu0 0.0
        %1412 = vmatpush1.msra.mxu0 0.0
        %1413 = vmatprep.subr.mxu0 0.0
        %1414 = vmatpush1.msra.mxu0 0.0
        %1415 = vmatprep.subr.mxu0 0.0
        %1416 = vmatpush1.msra.mxu0 0.0
        %1417 = vmatprep.subr.mxu0 0.0
        %1418 = vmatpush1.msra.mxu0 0.0
        %1419 = vmatprep.subr.mxu0 0.0
        %1420 = vmatpush1.msra.mxu0 0.0
        %1421 = vmatprep.mubr.f32.mxu0 0.0
        %v1422 = vand.u32 %v409, 4294901760
        %v1423 = vsub.f32 %v409, %v1422
        %v1424 = vand.u32 %v1423, 4294901760
        %1425 = vmatmul.mubr.f32.gmra.mrb[0].mxu0 %v1424
        %v1426 = vpop.f32.mrb[0].mxu0
        %v1427 = vadd.f32 %v1329, %v1426
        %v1428 = vpop.f32.mrb[0].mxu0
        %1429 = vmatprep.mubr.f32.mxu0 0.0
        %v1430 = vand.u32 %v412, 4294901760
        %v1431 = vsub.f32 %v412, %v1430
        %v1432 = vand.u32 %v1431, 4294901760
        %1433 = vmatmul.mubr.f32.gmra.mrb[0].mxu0 %v1432
        %v1434 = vpop.f32.mrb[0].mxu0
        %v1435 = vadd.f32 %v1336, %v1434
        %v1436 = vpop.f32.mrb[0].mxu0
        %1437 = vmatprep.mubr.f32.mxu0 0.0
        %v1438 = vand.u32 %v415, 4294901760
        %v1439 = vsub.f32 %v415, %v1438
        %v1440 = vand.u32 %v1439, 4294901760
        %1441 = vmatmul.mubr.f32.gmra.mrb[0].mxu0 %v1440
        %v1442 = vpop.f32.mrb[0].mxu0
        %v1443 = vadd.f32 %v1343, %v1442
        %v1444 = vpop.f32.mrb[0].mxu0
        %1445 = vmatprep.mubr.f32.mxu0 0.0
        %v1446 = vand.u32 %v418, 4294901760
        %v1447 = vsub.f32 %v418, %v1446
        %v1448 = vand.u32 %v1447, 4294901760
        %1449 = vmatmul.mubr.f32.gmra.mrb[0].mxu0 %v1448
        %v1450 = vpop.f32.mrb[0].mxu0
        %v1451 = vadd.f32 %v1350, %v1450
        %v1452 = vpop.f32.mrb[0].mxu0
        %1453 = vdwg.mxu0
        %1454 = vmatprep.subr.mxu0 0.0
        %v1455 = vand.u32 %v397, 4294901760
        %v1456 = vsub.f32 %v397, %v1455
        %v1457 = vand.u32 %v1456, 4294901760
        %1458 = vmatpush1.msra.mxu0 %v1457
        %1459 = vmatprep.subr.mxu0 0.0
        %v1460 = vand.u32 %v400, 4294901760
        %v1461 = vsub.f32 %v400, %v1460
        %v1462 = vand.u32 %v1461, 4294901760
        %1463 = vmatpush1.msra.mxu0 %v1462
        %1464 = vmatprep.subr.mxu0 0.0
        %v1465 = vand.u32 %v403, 4294901760
        %v1466 = vsub.f32 %v403, %v1465
        %v1467 = vand.u32 %v1466, 4294901760
        %1468 = vmatpush1.msra.mxu0 %v1467
        %1469 = vmatprep.subr.mxu0 0.0
        %v1470 = vand.u32 %v406, 4294901760
        %v1471 = vsub.f32 %v406, %v1470
        %v1472 = vand.u32 %v1471, 4294901760
        %1473 = vmatpush1.msra.mxu0 %v1472
        %1474 = vmatprep.subr.mxu0 0.0
        %1475 = vmatpush1.msra.mxu0 0.0
        %1476 = vmatprep.subr.mxu0 0.0
        %1477 = vmatpush1.msra.mxu0 0.0
        %1478 = vmatprep.subr.mxu0 0.0
        %1479 = vmatpush1.msra.mxu0 0.0
        %1480 = vmatprep.subr.mxu0 0.0
        %1481 = vmatpush1.msra.mxu0 0.0
        %1482 = vmatprep.subr.mxu0 0.0
        %1483 = vmatpush1.msra.mxu0 0.0
        %1484 = vmatprep.subr.mxu0 0.0
        %1485 = vmatpush1.msra.mxu0 0.0
        %1486 = vmatprep.subr.mxu0 0.0
        %1487 = vmatpush1.msra.mxu0 0.0
        %1488 = vmatprep.subr.mxu0 0.0
        %1489 = vmatpush1.msra.mxu0 0.0
        %1490 = vmatprep.subr.mxu0 0.0
        %1491 = vmatpush1.msra.mxu0 0.0
        %1492 = vmatprep.subr.mxu0 0.0
        %1493 = vmatpush1.msra.mxu0 0.0
        %1494 = vmatprep.subr.mxu0 0.0
        %1495 = vmatpush1.msra.mxu0 0.0
        %1496 = vmatprep.subr.mxu0 0.0
        %1497 = vmatpush1.msra.mxu0 0.0
        %1498 = vmatprep.subr.mxu0 0.0
        %1499 = vmatpush1.msra.mxu0 0.0
        %1500 = vmatprep.subr.mxu0 0.0
        %1501 = vmatpush1.msra.mxu0 0.0
        %1502 = vmatprep.subr.mxu0 0.0
        %1503 = vmatpush1.msra.mxu0 0.0
        %1504 = vmatprep.subr.mxu0 0.0
        %1505 = vmatpush1.msra.mxu0 0.0
        %1506 = vmatprep.subr.mxu0 0.0
        %1507 = vmatpush1.msra.mxu0 0.0
        %1508 = vmatprep.subr.mxu0 0.0
        %1509 = vmatpush1.msra.mxu0 0.0
        %1510 = vmatprep.subr.mxu0 0.0
        %1511 = vmatpush1.msra.mxu0 0.0
        %1512 = vmatprep.subr.mxu0 0.0
        %1513 = vmatpush1.msra.mxu0 0.0
        %1514 = vmatprep.subr.mxu0 0.0
        %1515 = vmatpush1.msra.mxu0 0.0
        %1516 = vmatprep.subr.mxu0 0.0
        %1517 = vmatpush1.msra.mxu0 0.0
        %1518 = vmatprep.subr.mxu0 0.0
        %1519 = vmatpush1.msra.mxu0 0.0
        %1520 = vmatprep.subr.mxu0 0.0
        %1521 = vmatpush1.msra.mxu0 0.0
        %1522 = vmatprep.subr.mxu0 0.0
        %1523 = vmatpush1.msra.mxu0 0.0
        %1524 = vmatprep.subr.mxu0 0.0
        %1525 = vmatpush1.msra.mxu0 0.0
        %1526 = vmatprep.subr.mxu0 0.0
        %1527 = vmatpush1.msra.mxu0 0.0
        %1528 = vmatprep.subr.mxu0 0.0
        %1529 = vmatpush1.msra.mxu0 0.0
        %1530 = vmatprep.mubr.f32.mxu0 0.0
        %v1531 = vand.u32 %v409, 4294901760
        %1532 = vmatmul.mubr.f32.gmra.mrb[0].mxu0 %v1531
        %v1533 = vpop.f32.mrb[0].mxu0
        %v1534 = vadd.f32 %v1427, %v1533
        %v1535 = vpop.f32.mrb[0].mxu0
        %1536 = vmatprep.mubr.f32.mxu0 0.0
        %v1537 = vand.u32 %v412, 4294901760
        %1538 = vmatmul.mubr.f32.gmra.mrb[0].mxu0 %v1537
        %v1539 = vpop.f32.mrb[0].mxu0
        %v1540 = vadd.f32 %v1435, %v1539
        %v1541 = vpop.f32.mrb[0].mxu0
        %1542 = vmatprep.mubr.f32.mxu0 0.0
        %v1543 = vand.u32 %v415, 4294901760
        %1544 = vmatmul.mubr.f32.gmra.mrb[0].mxu0 %v1543
        %v1545 = vpop.f32.mrb[0].mxu0
        %v1546 = vadd.f32 %v1443, %v1545
        %v1547 = vpop.f32.mrb[0].mxu0
        %1548 = vmatprep.mubr.f32.mxu0 0.0
        %v1549 = vand.u32 %v418, 4294901760
        %1550 = vmatmul.mubr.f32.gmra.mrb[0].mxu0 %v1549
        %v1551 = vpop.f32.mrb[0].mxu0
        %v1552 = vadd.f32 %v1451, %v1551
        %v1553 = vpop.f32.mrb[0].mxu0
        %1554 = vdwg.mxu0
        %1555 = vmatprep.subr.mxu0 0.0
        %v1556 = vand.u32 %v397, 4294901760
        %1557 = vmatpush1.msra.mxu0 %v1556
        %1558 = vmatprep.subr.mxu0 0.0
        %v1559 = vand.u32 %v400, 4294901760
        %1560 = vmatpush1.msra.mxu0 %v1559
        %1561 = vmatprep.subr.mxu0 0.0
        %v1562 = vand.u32 %v403, 4294901760
        %1563 = vmatpush1.msra.mxu0 %v1562
        %1564 = vmatprep.subr.mxu0 0.0
        %v1565 = vand.u32 %v406, 4294901760
        %1566 = vmatpush1.msra.mxu0 %v1565
        %1567 = vmatprep.subr.mxu0 0.0
        %1568 = vmatpush1.msra.mxu0 0.0
        %1569 = vmatprep.subr.mxu0 0.0
        %1570 = vmatpush1.msra.mxu0 0.0
        %1571 = vmatprep.subr.mxu0 0.0
        %1572 = vmatpush1.msra.mxu0 0.0
        %1573 = vmatprep.subr.mxu0 0.0
        %1574 = vmatpush1.msra.mxu0 0.0
        %1575 = vmatprep.subr.mxu0 0.0
        %1576 = vmatpush1.msra.mxu0 0.0
        %1577 = vmatprep.subr.mxu0 0.0
        %1578 = vmatpush1.msra.mxu0 0.0
        %1579 = vmatprep.subr.mxu0 0.0
        %1580 = vmatpush1.msra.mxu0 0.0
        %1581 = vmatprep.subr.mxu0 0.0
        %1582 = vmatpush1.msra.mxu0 0.0
        %1583 = vmatprep.subr.mxu0 0.0
        %1584 = vmatpush1.msra.mxu0 0.0
        %1585 = vmatprep.subr.mxu0 0.0
        %1586 = vmatpush1.msra.mxu0 0.0
        %1587 = vmatprep.subr.mxu0 0.0
        %1588 = vmatpush1.msra.mxu0 0.0
        %1589 = vmatprep.subr.mxu0 0.0
        %1590 = vmatpush1.msra.mxu0 0.0
        %1591 = vmatprep.subr.mxu0 0.0
        %1592 = vmatpush1.msra.mxu0 0.0
        %1593 = vmatprep.subr.mxu0 0.0
        %1594 = vmatpush1.msra.mxu0 0.0
        %1595 = vmatprep.subr.mxu0 0.0
        %1596 = vmatpush1.msra.mxu0 0.0
        %1597 = vmatprep.subr.mxu0 0.0
        %1598 = vmatpush1.msra.mxu0 0.0
        %1599 = vmatprep.subr.mxu0 0.0
        %1600 = vmatpush1.msra.mxu0 0.0
        %1601 = vmatprep.subr.mxu0 0.0
        %1602 = vmatpush1.msra.mxu0 0.0
        %1603 = vmatprep.subr.mxu0 0.0
        %1604 = vmatpush1.msra.mxu0 0.0
        %1605 = vmatprep.subr.mxu0 0.0
        %1606 = vmatpush1.msra.mxu0 0.0
        %1607 = vmatprep.subr.mxu0 0.0
        %1608 = vmatpush1.msra.mxu0 0.0
        %1609 = vmatprep.subr.mxu0 0.0
        %1610 = vmatpush1.msra.mxu0 0.0
        %1611 = vmatprep.subr.mxu0 0.0
        %1612 = vmatpush1.msra.mxu0 0.0
        %1613 = vmatprep.subr.mxu0 0.0
        %1614 = vmatpush1.msra.mxu0 0.0
        %1615 = vmatprep.subr.mxu0 0.0
        %1616 = vmatpush1.msra.mxu0 0.0
        %1617 = vmatprep.subr.mxu0 0.0
        %1618 = vmatpush1.msra.mxu0 0.0
        %1619 = vmatprep.subr.mxu0 0.0
        %1620 = vmatpush1.msra.mxu0 0.0
        %1621 = vmatprep.subr.mxu0 0.0
        %1622 = vmatpush1.msra.mxu0 0.0
        %1623 = vmatprep.mubr.f32.mxu0 0.0
        %v1624 = vand.u32 %v409, 4294901760
        %1625 = vmatmul.mubr.f32.gmra.mrb[0].mxu0 %v1624
        %v1626 = vpop.f32.mrb[0].mxu0
        %v1627 = vadd.f32 %v1534, %v1626
        %v1628 = vpop.f32.mrb[0].mxu0
        %1629 = vmatprep.mubr.f32.mxu0 0.0
        %v1630 = vand.u32 %v412, 4294901760
        %1631 = vmatmul.mubr.f32.gmra.mrb[0].mxu0 %v1630
        %v1632 = vpop.f32.mrb[0].mxu0
        %v1633 = vadd.f32 %v1540, %v1632
        %v1634 = vpop.f32.mrb[0].mxu0
        %1635 = vmatprep.mubr.f32.mxu0 0.0
        %v1636 = vand.u32 %v415, 4294901760
        %1637 = vmatmul.mubr.f32.gmra.mrb[0].mxu0 %v1636
        %v1638 = vpop.f32.mrb[0].mxu0
        %v1639 = vadd.f32 %v1546, %v1638
        %v1640 = vpop.f32.mrb[0].mxu0
        %1641 = vmatprep.mubr.f32.mxu0 0.0
        %v1642 = vand.u32 %v418, 4294901760
        %1643 = vmatmul.mubr.f32.gmra.mrb[0].mxu0 %v1642
        %v1644 = vpop.f32.mrb[0].mxu0
        %v1645 = vadd.f32 %v1552, %v1644
        %v1646 = vpop.f32.mrb[0].mxu0
        %1647 = vdwg.mxu0
        %v1648 = vmul.f32 %v1013, %v1013
        %v1649 = vmul.f32 %v1019, %v1019
        %v1650 = vmul.f32 %v1025, %v1025
        %v1651 = vmul.f32 %v1031, %v1031
        %v1652 = vsub.f32 %v1627, %v1648
        %v1653 = vsub.f32 %v1633, %v1649
        %v1654 = vsub.f32 %v1639, %v1650
        %v1655 = vsub.f32 %v1645, %v1651
        %1657 = vset.pattern.permute.xlu0 0
        %1658 = vperm.xlu0 %1657, %v1013
        %v1659 = vpop.permute.xlu0 %1658
        %1662 = vset.pattern.permute.xlu0 0
        %1663 = vperm.xlu0 %1662, %v1019
        %v1664 = vpop.permute.xlu0 %1663
        %1667 = vset.pattern.permute.xlu0 0
        %1668 = vperm.xlu0 %1667, %v1025
        %v1669 = vpop.permute.xlu0 %1668
        %1672 = vset.pattern.permute.xlu0 0
        %1673 = vperm.xlu0 %1672, %v1031
        %v1674 = vpop.permute.xlu0 %1673
        %v1676 = vsub.f32 %v355, %v1659
        %v1677 = vsub.f32 %v356, %v1659
        %v1678 = vsub.f32 %v357, %v1664
        %v1679 = vsub.f32 %v358, %v1664
        %v1680 = vsub.f32 %v359, %v1669
        %v1681 = vsub.f32 %v360, %v1669
        %v1682 = vsub.f32 %v361, %v1674
        %v1683 = vsub.f32 %v362, %v1674
        %v1684 = vadd.f32 %v1652, 1e-05
        %v1685 = vadd.f32 %v1653, 1e-05
        %v1686 = vadd.f32 %v1654, 1e-05
        %v1687 = vadd.f32 %v1655, 1e-05
        %v1688 = vrsqrt.pop %v1684
        %v1689 = vrsqrt.pop %v1685
        %v1690 = vrsqrt.pop %v1686
        %v1691 = vrsqrt.pop %v1687
        %1693 = vset.pattern.permute.xlu0 0
        %1694 = vperm.xlu0 %1693, %v1688
        %v1695 = vpop.permute.xlu0 %1694
        %1698 = vset.pattern.permute.xlu0 0
        %1699 = vperm.xlu0 %1698, %v1689
        %v1700 = vpop.permute.xlu0 %1699
        %1703 = vset.pattern.permute.xlu0 0
        %1704 = vperm.xlu0 %1703, %v1690
        %v1705 = vpop.permute.xlu0 %1704
        %1708 = vset.pattern.permute.xlu0 0
        %1709 = vperm.xlu0 %1708, %v1691
        %v1710 = vpop.permute.xlu0 %1709
        %v1712 = vmul.f32 %v1676, %v1695
        %v1713 = vmul.f32 %v1677, %v1695
        %v1714 = vmul.f32 %v1678, %v1700
        %v1715 = vmul.f32 %v1679, %v1700
        %v1716 = vmul.f32 %v1680, %v1705
        %v1717 = vmul.f32 %v1681, %v1705
        %v1718 = vmul.f32 %v1682, %v1710
        %v1719 = vmul.f32 %v1683, %v1710
        %1721 = vset.pattern.permute.xlu0 0
        %1722 = vperm.xlu0 %1721, %v367
        %v1723 = vpop.permute.xlu0 %1722
        %1726 = vset.pattern.permute.xlu0 0
        %1727 = vperm.xlu0 %1726, %v368
        %v1728 = vpop.permute.xlu0 %1727
        %1731 = vset.pattern.permute.xlu0 0
        %1732 = vperm.xlu0 %1731, %v369
        %v1733 = vpop.permute.xlu0 %1732
        %1736 = vset.pattern.permute.xlu0 0
        %1737 = vperm.xlu0 %1736, %v370
        %v1738 = vpop.permute.xlu0 %1737
        %v1740 = vmul.f32 %v1712, %v1723
        %v1741 = vmul.f32 %v1713, %v1723
        %v1742 = vmul.f32 %v1714, %v1728
        %v1743 = vmul.f32 %v1715, %v1728
        %v1744 = vmul.f32 %v1716, %v1733
        %v1745 = vmul.f32 %v1717, %v1733
        %v1746 = vmul.f32 %v1718, %v1738
        %v1747 = vmul.f32 %v1719, %v1738
        %1749 = vset.pattern.permute.xlu0 0
        %1750 = vperm.xlu0 %1749, %v371
        %v1751 = vpop.permute.xlu0 %1750
        %1754 = vset.pattern.permute.xlu0 0
        %1755 = vperm.xlu0 %1754, %v372
        %v1756 = vpop.permute.xlu0 %1755
        %1759 = vset.pattern.permute.xlu0 0
        %1760 = vperm.xlu0 %1759, %v373
        %v1761 = vpop.permute.xlu0 %1760
        %1764 = vset.pattern.permute.xlu0 0
        %1765 = vperm.xlu0 %1764, %v374
        %v1766 = vpop.permute.xlu0 %1765
        %v1768 = vadd.f32 %v1740, %v1751
        %v1769 = vadd.f32 %v1741, %v1751
        %v1770 = vadd.f32 %v1742, %v1756
        %v1771 = vadd.f32 %v1743, %v1756
        %v1772 = vadd.f32 %v1744, %v1761
        %v1773 = vadd.f32 %v1745, %v1761
        %v1774 = vadd.f32 %v1746, %v1766
        %v1775 = vadd.f32 %v1747, %v1766
        %v1776 = vsub.f32 0.0, %v1768
        %v1777 = vsub.f32 0.0, %v1769
        %v1778 = vsub.f32 0.0, %v1770
        %v1779 = vsub.f32 0.0, %v1771
        %v1780 = vsub.f32 0.0, %v1772
        %v1781 = vsub.f32 0.0, %v1773
        %v1782 = vsub.f32 0.0, %v1774
        %v1783 = vsub.f32 0.0, %v1775
        %v1784 = vmul.f32 %v1776, 1.442695
        %v1785 = vpow.pop %v1784
        %v1786 = vmul.f32 %v1777, 1.442695
        %v1787 = vpow.pop %v1786
        %v1788 = vmul.f32 %v1778, 1.442695
        %v1789 = vpow.pop %v1788
        %v1790 = vmul.f32 %v1779, 1.442695
        %v1791 = vpow.pop %v1790
        %v1792 = vmul.f32 %v1780, 1.442695
        %v1793 = vpow.pop %v1792
        %v1794 = vmul.f32 %v1781, 1.442695
        %v1795 = vpow.pop %v1794
        %v1796 = vmul.f32 %v1782, 1.442695
        %v1797 = vpow.pop %v1796
        %v1798 = vmul.f32 %v1783, 1.442695
        %v1799 = vpow.pop %v1798
        %v1800 = vadd.f32 %v1785, 1.0
        %v1801 = vadd.f32 %v1787, 1.0
        %v1802 = vadd.f32 %v1789, 1.0
        %v1803 = vadd.f32 %v1791, 1.0
        %v1804 = vadd.f32 %v1793, 1.0
        %v1805 = vadd.f32 %v1795, 1.0
        %v1806 = vadd.f32 %v1797, 1.0
        %v1807 = vadd.f32 %v1799, 1.0
        %v1808 = vrcp.pop %v1800
        %v1809 = vrcp.pop %v1801
        %v1810 = vrcp.pop %v1802
        %v1811 = vrcp.pop %v1803
        %v1812 = vrcp.pop %v1804
        %v1813 = vrcp.pop %v1805
        %v1814 = vrcp.pop %v1806
        %v1815 = vrcp.pop %v1807
        %v1816 = vmul.f32 %v1768, %v1808
        %v1817 = vmul.f32 %v1769, %v1809
        %v1818 = vmul.f32 %v1770, %v1810
        %v1819 = vmul.f32 %v1771, %v1811
        %v1820 = vmul.f32 %v1772, %v1812
        %v1821 = vmul.f32 %v1773, %v1813
        %v1822 = vmul.f32 %v1774, %v1814
        %v1823 = vmul.f32 %v1775, %v1815
        %v1824 = vld [vmem:[%s4] sm:$0xff]
        %v1825 = vld [vmem:[%s4 + $0x8] sm:$0xf]
        %v1826 = vld [vmem:[%s4 + $0xc] sm:$0xff]
        %v1827 = vld [vmem:[%s4 + $0x14] sm:$0xf]
        %v1828 = vld [vmem:[%s4 + $0x18] sm:$0xff]
        %v1829 = vld [vmem:[%s4 + $0x20] sm:$0xf]
        %v1830 = vld [vmem:[%s4 + $0x24] sm:$0xff]
        %v1831 = vld [vmem:[%s4 + $0x2c] sm:$0xf]
        %1832 = vrot.lane.b32.xlu0 %v1816, 17
        %v1833 = vpop.permute.xlu0 %1832
        %1834 = vrot.lane.b32.xlu0 %v1818, 17
        %v1835 = vpop.permute.xlu0 %1834
        %1836 = vrot.lane.b32.xlu0 %v1820, 17
        %v1837 = vpop.permute.xlu0 %1836
        %1838 = vrot.lane.b32.xlu0 %v1822, 17
        %v1839 = vpop.permute.xlu0 %1838
        %1840 = vrot.lane.b32.xlu0 %v1817, 17
        %v1841 = vpop.permute.xlu0 %1840
        %1842 = vrot.lane.b32.xlu0 %v1819, 17
        %v1843 = vpop.permute.xlu0 %1842
        %1844 = vrot.lane.b32.xlu0 %v1821, 17
        %v1845 = vpop.permute.xlu0 %1844
        %1846 = vrot.lane.b32.xlu0 %v1823, 17
        %v1847 = vpop.permute.xlu0 %1846
        %v1848 = vlaneseq
        %v1849 = vand.u32 %v1848, 127
        %vm1850 = vcmp.lt.s32.totalorder %v1849, 17
        %v1851 = vsel %vm1850, %v1833, %v1841
        %v1852 = vsel %vm1850, %v1835, %v1843
        %v1853 = vsel %vm1850, %v1837, %v1845
        %v1854 = vsel %vm1850, %v1839, %v1847
        %v1855 = vsel %vm1850, %v1841, %v1833
        %v1856 = vsel %vm1850, %v1843, %v1835
        %v1857 = vsel %vm1850, %v1845, %v1837
        %v1858 = vsel %vm1850, %v1847, %v1839
        %v1859 = vld [vmem:[#allocation5] sm:$0x3]
        %v1861 = vlaneseq
        %v1862 = vshrl.u32 %v1861, 7
        %v1863 = vsub.s32 0, %v1862
        %v1864 = vrot.slane %v1859, %v1863
        %v1865 = vlaneseq
        %v1866 = vshrl.u32 %v1865, 7
        %v1867 = vsub.s32 1, %v1866
        %v1868 = vrot.slane %v1859, %v1867
        %v1871 = vmul.f32 %v1855, %v1864
        %v1872 = vmul.f32 %v1851, %v1868
        %v1873 = vmul.f32 %v1856, %v1864
        %v1874 = vmul.f32 %v1852, %v1868
        %v1875 = vmul.f32 %v1857, %v1864
        %v1876 = vmul.f32 %v1853, %v1868
        %v1877 = vmul.f32 %v1858, %v1864
        %v1878 = vmul.f32 %v1854, %v1868
        %v1879 = vpack.c.bf16 %v1873, %v1871
        %v1880 = vpack.c.bf16 %v1874, %v1872
        %v1881 = vpack.c.bf16 %v1877, %v1875
        %v1882 = vpack.c.bf16 %v1878, %v1876
        %1883 = vrot.lane.b32.xlu0 %v1816, 16
        %v1884 = vpop.permute.xlu0 %1883
        %1885 = vrot.lane.b32.xlu0 %v1818, 16
        %v1886 = vpop.permute.xlu0 %1885
        %1887 = vrot.lane.b32.xlu0 %v1820, 16
        %v1888 = vpop.permute.xlu0 %1887
        %1889 = vrot.lane.b32.xlu0 %v1822, 16
        %v1890 = vpop.permute.xlu0 %1889
        %1891 = vrot.lane.b32.xlu0 %v1817, 16
        %v1892 = vpop.permute.xlu0 %1891
        %1893 = vrot.lane.b32.xlu0 %v1819, 16
        %v1894 = vpop.permute.xlu0 %1893
        %1895 = vrot.lane.b32.xlu0 %v1821, 16
        %v1896 = vpop.permute.xlu0 %1895
        %1897 = vrot.lane.b32.xlu0 %v1823, 16
        %v1898 = vpop.permute.xlu0 %1897
        %vm1899 = vcmp.lt.s32.totalorder %v1849, 16
        %v1900 = vsel %vm1899, %v1884, %v1892
        %v1901 = vsel %vm1899, %v1886, %v1894
        %v1902 = vsel %vm1899, %v1888, %v1896
        %v1903 = vsel %vm1899, %v1890, %v1898
        %v1904 = vsel %vm1899, %v1892, %v1884
        %v1905 = vsel %vm1899, %v1894, %v1886
        %v1906 = vsel %vm1899, %v1896, %v1888
        %v1907 = vsel %vm1899, %v1898, %v1890
        %s1908 = scalar_lea.vmem [#allocation5], 2
        %v1909 = vld [vmem:[%s1908] sm:$0x3]
        %v1911 = vlaneseq
        %v1912 = vshrl.u32 %v1911, 7
        %v1913 = vsub.s32 0, %v1912
        %v1914 = vrot.slane %v1909, %v1913
        %v1915 = vlaneseq
        %v1916 = vshrl.u32 %v1915, 7
        %v1917 = vsub.s32 1, %v1916
        %v1918 = vrot.slane %v1909, %v1917
        %v1921 = vmul.f32 %v1904, %v1914
        %v1922 = vmul.f32 %v1900, %v1918
        %v1923 = vmul.f32 %v1905, %v1914
        %v1924 = vmul.f32 %v1901, %v1918
        %v1925 = vmul.f32 %v1906, %v1914
        %v1926 = vmul.f32 %v1902, %v1918
        %v1927 = vmul.f32 %v1907, %v1914
        %v1928 = vmul.f32 %v1903, %v1918
        %v1929 = vpack.c.bf16 %v1923, %v1921
        %v1930 = vpack.c.bf16 %v1924, %v1922
        %v1931 = vpack.c.bf16 %v1927, %v1925
        %v1932 = vpack.c.bf16 %v1928, %v1926
        %1933 = vrot.lane.b32.xlu0 %v1816, 15
        %v1934 = vpop.permute.xlu0 %1933
        %1935 = vrot.lane.b32.xlu0 %v1818, 15
        %v1936 = vpop.permute.xlu0 %1935
        %1937 = vrot.lane.b32.xlu0 %v1820, 15
        %v1938 = vpop.permute.xlu0 %1937
        %1939 = vrot.lane.b32.xlu0 %v1822, 15
        %v1940 = vpop.permute.xlu0 %1939
        %1941 = vrot.lane.b32.xlu0 %v1817, 15
        %v1942 = vpop.permute.xlu0 %1941
        %1943 = vrot.lane.b32.xlu0 %v1819, 15
        %v1944 = vpop.permute.xlu0 %1943
        %1945 = vrot.lane.b32.xlu0 %v1821, 15
        %v1946 = vpop.permute.xlu0 %1945
        %1947 = vrot.lane.b32.xlu0 %v1823, 15
        %v1948 = vpop.permute.xlu0 %1947
        %vm1949 = vcmp.lt.s32.totalorder %v1849, 15
        %v1950 = vsel %vm1949, %v1934, %v1942
        %v1951 = vsel %vm1949, %v1936, %v1944
        %v1952 = vsel %vm1949, %v1938, %v1946
        %v1953 = vsel %vm1949, %v1940, %v1948
        %v1954 = vsel %vm1949, %v1942, %v1934
        %v1955 = vsel %vm1949, %v1944, %v1936
        %v1956 = vsel %vm1949, %v1946, %v1938
        %v1957 = vsel %vm1949, %v1948, %v1940
        %s1958 = scalar_lea.vmem [#allocation5], 4
        %v1959 = vld [vmem:[%s1958] sm:$0x3]
        %v1961 = vlaneseq
        %v1962 = vshrl.u32 %v1961, 7
        %v1963 = vsub.s32 0, %v1962
        %v1964 = vrot.slane %v1959, %v1963
        %v1965 = vlaneseq
        %v1966 = vshrl.u32 %v1965, 7
        %v1967 = vsub.s32 1, %v1966
        %v1968 = vrot.slane %v1959, %v1967
        %v1971 = vmul.f32 %v1954, %v1964
        %v1972 = vmul.f32 %v1950, %v1968
        %v1973 = vmul.f32 %v1955, %v1964
        %v1974 = vmul.f32 %v1951, %v1968
        %v1975 = vmul.f32 %v1956, %v1964
        %v1976 = vmul.f32 %v1952, %v1968
        %v1977 = vmul.f32 %v1957, %v1964
        %v1978 = vmul.f32 %v1953, %v1968
        %v1979 = vpack.c.bf16 %v1973, %v1971
        %v1980 = vpack.c.bf16 %v1974, %v1972
        %v1981 = vpack.c.bf16 %v1977, %v1975
        %v1982 = vpack.c.bf16 %v1978, %v1976
        %1983 = vrot.lane.b32.xlu0 %v1816, 1
        %v1984 = vpop.permute.xlu0 %1983
        %1985 = vrot.lane.b32.xlu0 %v1818, 1
        %v1986 = vpop.permute.xlu0 %1985
        %1987 = vrot.lane.b32.xlu0 %v1820, 1
        %v1988 = vpop.permute.xlu0 %1987
        %1989 = vrot.lane.b32.xlu0 %v1822, 1
        %v1990 = vpop.permute.xlu0 %1989
        %1991 = vrot.lane.b32.xlu0 %v1817, 1
        %v1992 = vpop.permute.xlu0 %1991
        %1993 = vrot.lane.b32.xlu0 %v1819, 1
        %v1994 = vpop.permute.xlu0 %1993
        %1995 = vrot.lane.b32.xlu0 %v1821, 1
        %v1996 = vpop.permute.xlu0 %1995
        %1997 = vrot.lane.b32.xlu0 %v1823, 1
        %v1998 = vpop.permute.xlu0 %1997
        %vm1999 = vcmp.lt.s32.totalorder %v1849, 1
        %v2000 = vsel %vm1999, %v1984, %v1992
        %v2001 = vsel %vm1999, %v1986, %v1994
        %v2002 = vsel %vm1999, %v1988, %v1996
        %v2003 = vsel %vm1999, %v1990, %v1998
        %v2004 = vsel %vm1999, %v1992, %v1984
        %v2005 = vsel %vm1999, %v1994, %v1986
        %v2006 = vsel %vm1999, %v1996, %v1988
        %v2007 = vsel %vm1999, %v1998, %v1990
        %s2008 = scalar_lea.vmem [#allocation5], 6
        %v2009 = vld [vmem:[%s2008] sm:$0x3]
        %v2011 = vlaneseq
        %v2012 = vshrl.u32 %v2011, 7
        %v2013 = vsub.s32 0, %v2012
        %v2014 = vrot.slane %v2009, %v2013
        %v2015 = vlaneseq
        %v2016 = vshrl.u32 %v2015, 7
        %v2017 = vsub.s32 1, %v2016
        %v2018 = vrot.slane %v2009, %v2017
        %v2021 = vmul.f32 %v2004, %v2014
        %v2022 = vmul.f32 %v2000, %v2018
        %v2023 = vmul.f32 %v2005, %v2014
        %v2024 = vmul.f32 %v2001, %v2018
        %v2025 = vmul.f32 %v2006, %v2014
        %v2026 = vmul.f32 %v2002, %v2018
        %v2027 = vmul.f32 %v2007, %v2014
        %v2028 = vmul.f32 %v2003, %v2018
        %v2029 = vpack.c.bf16 %v2023, %v2021
        %v2030 = vpack.c.bf16 %v2024, %v2022
        %v2031 = vpack.c.bf16 %v2027, %v2025
        %v2032 = vpack.c.bf16 %v2028, %v2026
        %s2033 = scalar_lea.vmem [#allocation5], 8
        %v2034 = vld [vmem:[%s2033] sm:$0x3]
        %v2036 = vlaneseq
        %v2037 = vshrl.u32 %v2036, 7
        %v2038 = vsub.s32 0, %v2037
        %v2039 = vrot.slane %v2034, %v2038
        %v2040 = vlaneseq
        %v2041 = vshrl.u32 %v2040, 7
        %v2042 = vsub.s32 1, %v2041
        %v2043 = vrot.slane %v2034, %v2042
        %v2046 = vmul.f32 %v1816, %v2039
        %v2047 = vmul.f32 %v1817, %v2043
        %v2048 = vmul.f32 %v1818, %v2039
        %v2049 = vmul.f32 %v1819, %v2043
        %v2050 = vmul.f32 %v1820, %v2039
        %v2051 = vmul.f32 %v1821, %v2043
        %v2052 = vmul.f32 %v1822, %v2039
        %v2053 = vmul.f32 %v1823, %v2043
        %v2054 = vpack.c.bf16 %v2048, %v2046
        %v2055 = vpack.c.bf16 %v2049, %v2047
        %v2056 = vpack.c.bf16 %v2052, %v2050
        %v2057 = vpack.c.bf16 %v2053, %v2051
        %2058 = vrot.lane.b32.xlu0 %v1816, 127
        %v2059 = vpop.permute.xlu0 %2058
        %2060 = vrot.lane.b32.xlu0 %v1818, 127
        %v2061 = vpop.permute.xlu0 %2060
        %2062 = vrot.lane.b32.xlu0 %v1820, 127
        %v2063 = vpop.permute.xlu0 %2062
        %2064 = vrot.lane.b32.xlu0 %v1822, 127
        %v2065 = vpop.permute.xlu0 %2064
        %2066 = vrot.lane.b32.xlu0 %v1817, 127
        %v2067 = vpop.permute.xlu0 %2066
        %2068 = vrot.lane.b32.xlu0 %v1819, 127
        %v2069 = vpop.permute.xlu0 %2068
        %2070 = vrot.lane.b32.xlu0 %v1821, 127
        %v2071 = vpop.permute.xlu0 %2070
        %2072 = vrot.lane.b32.xlu0 %v1823, 127
        %v2073 = vpop.permute.xlu0 %2072
        %vm2074 = vcmp.lt.s32.totalorder %v1849, 127
        %v2075 = vsel %vm2074, %v2059, %v2067
        %v2076 = vsel %vm2074, %v2061, %v2069
        %v2077 = vsel %vm2074, %v2063, %v2071
        %v2078 = vsel %vm2074, %v2065, %v2073
        %v2079 = vsel %vm2074, %v2067, %v2059
        %v2080 = vsel %vm2074, %v2069, %v2061
        %v2081 = vsel %vm2074, %v2071, %v2063
        %v2082 = vsel %vm2074, %v2073, %v2065
        %s2083 = scalar_lea.vmem [#allocation5], 10
        %v2084 = vld [vmem:[%s2083] sm:$0x3]
        %v2086 = vlaneseq
        %v2087 = vshrl.u32 %v2086, 7
        %v2088 = vsub.s32 0, %v2087
        %v2089 = vrot.slane %v2084, %v2088
        %v2090 = vlaneseq
        %v2091 = vshrl.u32 %v2090, 7
        %v2092 = vsub.s32 1, %v2091
        %v2093 = vrot.slane %v2084, %v2092
        %v2096 = vmul.f32 %v2075, %v2089
        %v2097 = vmul.f32 %v2079, %v2093
        %v2098 = vmul.f32 %v2076, %v2089
        %v2099 = vmul.f32 %v2080, %v2093
        %v2100 = vmul.f32 %v2077, %v2089
        %v2101 = vmul.f32 %v2081, %v2093
        %v2102 = vmul.f32 %v2078, %v2089
        %v2103 = vmul.f32 %v2082, %v2093
        %v2104 = vpack.c.bf16 %v2098, %v2096
        %v2105 = vpack.c.bf16 %v2099, %v2097
        %v2106 = vpack.c.bf16 %v2102, %v2100
        %v2107 = vpack.c.bf16 %v2103, %v2101
        %2108 = vrot.lane.b32.xlu0 %v1816, 113
        %v2109 = vpop.permute.xlu0 %2108
        %2110 = vrot.lane.b32.xlu0 %v1818, 113
        %v2111 = vpop.permute.xlu0 %2110
        %2112 = vrot.lane.b32.xlu0 %v1820, 113
        %v2113 = vpop.permute.xlu0 %2112
        %2114 = vrot.lane.b32.xlu0 %v1822, 113
        %v2115 = vpop.permute.xlu0 %2114
        %2116 = vrot.lane.b32.xlu0 %v1817, 113
        %v2117 = vpop.permute.xlu0 %2116
        %2118 = vrot.lane.b32.xlu0 %v1819, 113
        %v2119 = vpop.permute.xlu0 %2118
        %2120 = vrot.lane.b32.xlu0 %v1821, 113
        %v2121 = vpop.permute.xlu0 %2120
        %2122 = vrot.lane.b32.xlu0 %v1823, 113
        %v2123 = vpop.permute.xlu0 %2122
        %vm2124 = vcmp.lt.s32.totalorder %v1849, 113
        %v2125 = vsel %vm2124, %v2109, %v2117
        %v2126 = vsel %vm2124, %v2111, %v2119
        %v2127 = vsel %vm2124, %v2113, %v2121
        %v2128 = vsel %vm2124, %v2115, %v2123
        %v2129 = vsel %vm2124, %v2117, %v2109
        %v2130 = vsel %vm2124, %v2119, %v2111
        %v2131 = vsel %vm2124, %v2121, %v2113
        %v2132 = vsel %vm2124, %v2123, %v2115
        %s2133 = scalar_lea.vmem [#allocation5], 12
        %v2134 = vld [vmem:[%s2133] sm:$0x3]
        %v2136 = vlaneseq
        %v2137 = vshrl.u32 %v2136, 7
        %v2138 = vsub.s32 0, %v2137
        %v2139 = vrot.slane %v2134, %v2138
        %v2140 = vlaneseq
        %v2141 = vshrl.u32 %v2140, 7
        %v2142 = vsub.s32 1, %v2141
        %v2143 = vrot.slane %v2134, %v2142
        %v2146 = vmul.f32 %v2125, %v2139
        %v2147 = vmul.f32 %v2129, %v2143
        %v2148 = vmul.f32 %v2126, %v2139
        %v2149 = vmul.f32 %v2130, %v2143
        %v2150 = vmul.f32 %v2127, %v2139
        %v2151 = vmul.f32 %v2131, %v2143
        %v2152 = vmul.f32 %v2128, %v2139
        %v2153 = vmul.f32 %v2132, %v2143
        %v2154 = vpack.c.bf16 %v2148, %v2146
        %v2155 = vpack.c.bf16 %v2149, %v2147
        %v2156 = vpack.c.bf16 %v2152, %v2150
        %v2157 = vpack.c.bf16 %v2153, %v2151
        %2158 = vrot.lane.b32.xlu0 %v1816, 112
        %v2159 = vpop.permute.xlu0 %2158
        %2160 = vrot.lane.b32.xlu0 %v1818, 112
        %v2161 = vpop.permute.xlu0 %2160
        %2162 = vrot.lane.b32.xlu0 %v1820, 112
        %v2163 = vpop.permute.xlu0 %2162
        %2164 = vrot.lane.b32.xlu0 %v1822, 112
        %v2165 = vpop.permute.xlu0 %2164
        %2166 = vrot.lane.b32.xlu0 %v1817, 112
        %v2167 = vpop.permute.xlu0 %2166
        %2168 = vrot.lane.b32.xlu0 %v1819, 112
        %v2169 = vpop.permute.xlu0 %2168
        %2170 = vrot.lane.b32.xlu0 %v1821, 112
        %v2171 = vpop.permute.xlu0 %2170
        %2172 = vrot.lane.b32.xlu0 %v1823, 112
        %v2173 = vpop.permute.xlu0 %2172
        %vm2174 = vcmp.lt.s32.totalorder %v1849, 112
        %v2175 = vsel %vm2174, %v2159, %v2167
        %v2176 = vsel %vm2174, %v2161, %v2169
        %v2177 = vsel %vm2174, %v2163, %v2171
        %v2178 = vsel %vm2174, %v2165, %v2173
        %v2179 = vsel %vm2174, %v2167, %v2159
        %v2180 = vsel %vm2174, %v2169, %v2161
        %v2181 = vsel %vm2174, %v2171, %v2163
        %v2182 = vsel %vm2174, %v2173, %v2165
        %s2183 = scalar_lea.vmem [#allocation5], 14
        %v2184 = vld [vmem:[%s2183] sm:$0x3]
        %v2186 = vlaneseq
        %v2187 = vshrl.u32 %v2186, 7
        %v2188 = vsub.s32 0, %v2187
        %v2189 = vrot.slane %v2184, %v2188
        %v2190 = vlaneseq
        %v2191 = vshrl.u32 %v2190, 7
        %v2192 = vsub.s32 1, %v2191
        %v2193 = vrot.slane %v2184, %v2192
        %v2196 = vmul.f32 %v2175, %v2189
        %v2197 = vmul.f32 %v2179, %v2193
        %v2198 = vmul.f32 %v2176, %v2189
        %v2199 = vmul.f32 %v2180, %v2193
        %v2200 = vmul.f32 %v2177, %v2189
        %v2201 = vmul.f32 %v2181, %v2193
        %v2202 = vmul.f32 %v2178, %v2189
        %v2203 = vmul.f32 %v2182, %v2193
        %v2204 = vpack.c.bf16 %v2198, %v2196
        %v2205 = vpack.c.bf16 %v2199, %v2197
        %v2206 = vpack.c.bf16 %v2202, %v2200
        %v2207 = vpack.c.bf16 %v2203, %v2201
        %2208 = vrot.lane.b32.xlu0 %v1816, 111
        %v2209 = vpop.permute.xlu0 %2208
        %2210 = vrot.lane.b32.xlu0 %v1818, 111
        %v2211 = vpop.permute.xlu0 %2210
        %2212 = vrot.lane.b32.xlu0 %v1820, 111
        %v2213 = vpop.permute.xlu0 %2212
        %2214 = vrot.lane.b32.xlu0 %v1822, 111
        %v2215 = vpop.permute.xlu0 %2214
        %2216 = vrot.lane.b32.xlu0 %v1817, 111
        %v2217 = vpop.permute.xlu0 %2216
        %2218 = vrot.lane.b32.xlu0 %v1819, 111
        %v2219 = vpop.permute.xlu0 %2218
        %2220 = vrot.lane.b32.xlu0 %v1821, 111
        %v2221 = vpop.permute.xlu0 %2220
        %2222 = vrot.lane.b32.xlu0 %v1823, 111
        %v2223 = vpop.permute.xlu0 %2222
        %vm2224 = vcmp.lt.s32.totalorder %v1849, 111
        %v2225 = vsel %vm2224, %v2209, %v2217
        %v2226 = vsel %vm2224, %v2211, %v2219
        %v2227 = vsel %vm2224, %v2213, %v2221
        %v2228 = vsel %vm2224, %v2215, %v2223
        %v2229 = vsel %vm2224, %v2217, %v2209
        %v2230 = vsel %vm2224, %v2219, %v2211
        %v2231 = vsel %vm2224, %v2221, %v2213
        %v2232 = vsel %vm2224, %v2223, %v2215
        %s2233 = scalar_lea.vmem [#allocation5], 16
        %v2234 = vld [vmem:[%s2233] sm:$0x3]
        %v2236 = vlaneseq
        %v2237 = vshrl.u32 %v2236, 7
        %v2238 = vsub.s32 0, %v2237
        %v2239 = vrot.slane %v2234, %v2238
        %v2240 = vlaneseq
        %v2241 = vshrl.u32 %v2240, 7
        %v2242 = vsub.s32 1, %v2241
        %v2243 = vrot.slane %v2234, %v2242
        %v2246 = vmul.f32 %v2225, %v2239
        %v2247 = vmul.f32 %v2229, %v2243
        %v2248 = vmul.f32 %v2226, %v2239
        %v2249 = vmul.f32 %v2230, %v2243
        %v2250 = vmul.f32 %v2227, %v2239
        %v2251 = vmul.f32 %v2231, %v2243
        %v2252 = vmul.f32 %v2228, %v2239
        %v2253 = vmul.f32 %v2232, %v2243
        %v2254 = vpack.c.bf16 %v2248, %v2246
        %v2255 = vpack.c.bf16 %v2249, %v2247
        %v2256 = vpack.c.bf16 %v2252, %v2250
        %v2257 = vpack.c.bf16 %v2253, %v2251
        %v2258 = vld [vmem:[%s5] sm:$0xff]
        %v2259 = vld [vmem:[%s5 + $0x8] sm:$0xff]
        %v2260 = vld [vmem:[%s5 + $0x10] sm:$0xff]
        %v2261 = vld [vmem:[%s5 + $0x18] sm:$0xff]
        %2263 = vset.pattern.permute.xlu0 0
        %2264 = vperm.xlu0 %2263, %v2258
        %v2265 = vpop.permute.xlu0 %2264
        %2268 = vset.pattern.permute.xlu0 0
        %2269 = vperm.xlu0 %2268, %v2259
        %v2270 = vpop.permute.xlu0 %2269
        %2273 = vset.pattern.permute.xlu0 0
        %2274 = vperm.xlu0 %2273, %v2260
        %v2275 = vpop.permute.xlu0 %2274
        %2278 = vset.pattern.permute.xlu0 0
        %2279 = vperm.xlu0 %2278, %v2261
        %v2280 = vpop.permute.xlu0 %2279
        %v2290 = vunpack.c.l.b16 %v1824
        %v2291 = vunpack.c.h.b16 %v1824
        %v2292 = vunpack.c.l.b16 %v1825
        %v2293 = vunpack.c.l.b16 %v1826
        %v2294 = vunpack.c.h.b16 %v1826
        %v2295 = vunpack.c.l.b16 %v1827
        %v2296 = vunpack.c.l.b16 %v1828
        %v2297 = vunpack.c.h.b16 %v1828
        %v2298 = vunpack.c.l.b16 %v1829
        %v2299 = vunpack.c.l.b16 %v1830
        %v2300 = vunpack.c.h.b16 %v1830
        %v2301 = vunpack.c.l.b16 %v1831
        %v2302 = vpack.c.b16 %v2293, %v2290
        %v2303 = vpack.c.b16 %v2294, %v2291
        %v2304 = vpack.c.b16 %v2295, %v2292
        %v2305 = vpack.c.b16 %v2299, %v2296
        %v2306 = vpack.c.b16 %v2300, %v2297
        %v2307 = vpack.c.b16 %v2301, %v2298
        %v2313 = vsel %vm407, %v2304, 0
        %v2316 = vsel %vm407, %v2307, 0
        %2318 = vmatprep.subr.bf16.mxu0 %v1880
        %2319 = vmatpush1.bf16.msra.mxu0 %v1879
        %2320 = vmatprep.subr.bf16.mxu0 %v1882
        %2321 = vmatpush1.bf16.msra.mxu0 %v1881
        %2322 = vmatprep.subr.bf16.mxu0 %v1930
        %2323 = vmatpush1.bf16.msra.mxu0 %v1929
        %2324 = vmatprep.subr.bf16.mxu0 %v1932
        %2325 = vmatpush1.bf16.msra.mxu0 %v1931
        %2326 = vmatprep.subr.bf16.mxu0 %v1980
        %2327 = vmatpush1.bf16.msra.mxu0 %v1979
        %2328 = vmatprep.subr.bf16.mxu0 %v1982
        %2329 = vmatpush1.bf16.msra.mxu0 %v1981
        %2330 = vmatprep.subr.bf16.mxu0 %v2030
        %2331 = vmatpush1.bf16.msra.mxu0 %v2029
        %2332 = vmatprep.subr.bf16.mxu0 %v2032
        %2333 = vmatpush1.bf16.msra.mxu0 %v2031
        %2334 = vmatprep.subr.bf16.mxu0 %v2055
        %2335 = vmatpush1.bf16.msra.mxu0 %v2054
        %2336 = vmatprep.subr.bf16.mxu0 %v2057
        %2337 = vmatpush1.bf16.msra.mxu0 %v2056
        %2338 = vmatprep.subr.bf16.mxu0 %v2105
        %2339 = vmatpush1.bf16.msra.mxu0 %v2104
        %2340 = vmatprep.subr.bf16.mxu0 %v2107
        %2341 = vmatpush1.bf16.msra.mxu0 %v2106
        %2342 = vmatprep.subr.bf16.mxu0 %v2155
        %2343 = vmatpush1.bf16.msra.mxu0 %v2154
        %2344 = vmatprep.subr.bf16.mxu0 %v2157
        %2345 = vmatpush1.bf16.msra.mxu0 %v2156
        %2346 = vmatprep.subr.bf16.mxu0 %v2205
        %2347 = vmatpush1.bf16.msra.mxu0 %v2204
        %2348 = vmatprep.subr.bf16.mxu0 %v2207
        %2349 = vmatpush1.bf16.msra.mxu0 %v2206
        %2350 = vmatprep.mubr.bf16.mxu0 %v2303
        %2351 = vmatmul.mubr.bf16.gmra.mrb[0].mxu0 %v2302
        %v2352 = vpop.f32.mrb[0].mxu0
        %v2353 = vadd.f32 %v2265, %v2352
        %v2354 = vpop.f32.mrb[0].mxu0
        %v2355 = vadd.f32 %v2265, %v2354
        %v2356 = vpop.f32.mrb[0].mxu0
        %v2357 = vadd.f32 %v2270, %v2356
        %v2358 = vpop.f32.mrb[0].mxu0
        %v2359 = vadd.f32 %v2270, %v2358
        %2360 = vmatprep.mubr.bf16.mxu0 %v2306
        %2361 = vmatmul.mubr.bf16.gmra.mrb[0].mxu0 %v2305
        %v2362 = vpop.f32.mrb[0].mxu0
        %v2363 = vadd.f32 %v2275, %v2362
        %v2364 = vpop.f32.mrb[0].mxu0
        %v2365 = vadd.f32 %v2275, %v2364
        %v2366 = vpop.f32.mrb[0].mxu0
        %v2367 = vadd.f32 %v2280, %v2366
        %v2368 = vpop.f32.mrb[0].mxu0
        %v2369 = vadd.f32 %v2280, %v2368
        %2370 = vdwg.mxu0
        %2371 = vmatprep.subr.bf16.mxu0 %v2255
        %2372 = vmatpush1.bf16.msra.mxu0 %v2254
        %2373 = vmatprep.subr.bf16.mxu0 %v2257
        %2374 = vmatpush1.bf16.msra.mxu0 %v2256
        %2375 = vmatprep.subr.bf16.mxu0 0
        %2376 = vmatpush1.bf16.msra.mxu0 0
        %2377 = vmatprep.subr.bf16.mxu0 0
        %2378 = vmatpush1.bf16.msra.mxu0 0
        %2379 = vmatprep.subr.bf16.mxu0 0
        %2380 = vmatpush1.bf16.msra.mxu0 0
        %2381 = vmatprep.subr.bf16.mxu0 0
        %2382 = vmatpush1.bf16.msra.mxu0 0
        %2383 = vmatprep.subr.bf16.mxu0 0
        %2384 = vmatpush1.bf16.msra.mxu0 0
        %2385 = vmatprep.subr.bf16.mxu0 0
        %2386 = vmatpush1.bf16.msra.mxu0 0
        %2387 = vmatprep.subr.bf16.mxu0 0
        %2388 = vmatpush1.bf16.msra.mxu0 0
        %2389 = vmatprep.subr.bf16.mxu0 0
        %2390 = vmatpush1.bf16.msra.mxu0 0
        %2391 = vmatprep.subr.bf16.mxu0 0
        %2392 = vmatpush1.bf16.msra.mxu0 0
        %2393 = vmatprep.subr.bf16.mxu0 0
        %2394 = vmatpush1.bf16.msra.mxu0 0
        %2395 = vmatprep.subr.bf16.mxu0 0
        %2396 = vmatpush1.bf16.msra.mxu0 0
        %2397 = vmatprep.subr.bf16.mxu0 0
        %2398 = vmatpush1.bf16.msra.mxu0 0
        %2399 = vmatprep.subr.bf16.mxu0 0
        %2400 = vmatpush1.bf16.msra.mxu0 0
        %2401 = vmatprep.subr.bf16.mxu0 0
        %2402 = vmatpush1.bf16.msra.mxu0 0
        %2403 = vmatprep.mubr.bf16.mxu0 0
        %2404 = vmatmul.mubr.bf16.gmra.mrb[0].mxu0 %v2313
        %v2405 = vpop.f32.mrb[0].mxu0
        %v2406 = vadd.f32 %v2353, %v2405
        %v2407 = vpop.f32.mrb[0].mxu0
        %v2408 = vadd.f32 %v2355, %v2407
        %v2409 = vpop.f32.mrb[0].mxu0
        %v2410 = vadd.f32 %v2357, %v2409
        %v2411 = vpop.f32.mrb[0].mxu0
        %v2412 = vadd.f32 %v2359, %v2411
        %2413 = vmatprep.mubr.bf16.mxu0 0
        %2414 = vmatmul.mubr.bf16.gmra.mrb[0].mxu0 %v2316
        %v2415 = vpop.f32.mrb[0].mxu0
        %v2416 = vadd.f32 %v2363, %v2415
        %v2417 = vpop.f32.mrb[0].mxu0
        %v2418 = vadd.f32 %v2365, %v2417
        %v2419 = vpop.f32.mrb[0].mxu0
        %v2420 = vadd.f32 %v2367, %v2419
        %v2421 = vpop.f32.mrb[0].mxu0
        %v2422 = vadd.f32 %v2369, %v2421
        %2423 = vdwg.mxu0
        %v2424 = vld [vmem:[%s353] sm:$0xff]
        %v2425 = vld [vmem:[%s353 + $0x8] sm:$0xff]
        %v2426 = vld [vmem:[%s353 + $0x10] sm:$0xff]
        %v2427 = vld [vmem:[%s353 + $0x18] sm:$0xff]
        %2429 = vset.pattern.permute.xlu0 0
        %2430 = vperm.xlu0 %2429, %v2424
        %v2431 = vpop.permute.xlu0 %2430
        %2434 = vset.pattern.permute.xlu0 0
        %2435 = vperm.xlu0 %2434, %v2425
        %v2436 = vpop.permute.xlu0 %2435
        %2439 = vset.pattern.permute.xlu0 0
        %2440 = vperm.xlu0 %2439, %v2426
        %v2441 = vpop.permute.xlu0 %2440
        %2444 = vset.pattern.permute.xlu0 0
        %2445 = vperm.xlu0 %2444, %v2427
        %v2446 = vpop.permute.xlu0 %2445
        %v2448 = vadd.f32 %v2406, %v2431
        %v2449 = vadd.f32 %v2408, %v2431
        %v2450 = vadd.f32 %v2410, %v2436
        %v2451 = vadd.f32 %v2412, %v2436
        %v2452 = vadd.f32 %v2416, %v2441
        %v2453 = vadd.f32 %v2418, %v2441
        %v2454 = vadd.f32 %v2420, %v2446
        %v2455 = vadd.f32 %v2422, %v2446
        %2456 = vst [vmem:[%s343] sm:$0xff] %v2448
        %2457 = vst [vmem:[%s343 + $0x8] sm:$0xff] %v2449
        %2458 = vst [vmem:[%s343 + $0x10] sm:$0xff] %v2450
        %2459 = vst [vmem:[%s343 + $0x18] sm:$0xff] %v2451
        %2460 = vst [vmem:[%s343 + $0x20] sm:$0xff] %v2452
        %2461 = vst [vmem:[%s343 + $0x28] sm:$0xff] %v2453
        %2462 = vst [vmem:[%s343 + $0x30] sm:$0xff] %v2454
        %2463 = vst [vmem:[%s343 + $0x38] sm:$0xff] %v2455
        %s2464 = sand.u32 %s210, 1
        %s2465 = scalar_lea.sflag [#allocation4], %s2464
        %s2466 = sand.u32 %s210, 1
        %s2467 = smul.addr %s2466, 64
        %s2468 = scalar_lea.vmem [#allocation7], %s2467
        // Predicated region
        $region61: #{tpu_custom_call.1} parent=51 // pred_check
          %p2469 = pneg %p220
        $region62: #{tpu_custom_call.1} parent=51 // pred_check_branch
          %2471 = sbr.rel (%p2469) target = $region64
        $region63: #{tpu_custom_call.1} parent=51 // pred_region
          %s2473 = ssub.s32 1024, 1024
          %2474 = vsyncadd %s2465, %s2473
          %s2475 = smul.addr %s24, 8
          %s2476 = smul.addr %s2475, 128
          %s2477 = scalar_lea.hbm %s8, %s2476
          %s2478 = sshll.u32 %s2468, 4
          %s2479 = int_to_ptr.vmem [resolvable:$true] %s2478
          %2484 = dma.vmem_to_hbm [thread:$0]  %s2479, 1024, %s2477, %s2465, 256, 256, 16
        $region64: #{tpu_custom_call.1} parent=51 // pred_fallthru
          _
      $region52: #{tpu_custom_call.1} parent=5 // pred_fallthru
        _
      %p2485 = scmp.le.s32.totalorder 2, %s19
      // Predicated region
      $region65: #{tpu_custom_call.1} parent=5 // pred_check
        %p2486 = pneg %p2485
      $region66: #{tpu_custom_call.1} parent=5 // pred_check_branch
        %2488 = sbr.rel (%p2486) target = $region68
      $region67: #{tpu_custom_call.1} parent=5 // pred_region
        %s2489 = ssub.s32 %s19, 2
        // Predicated region
        $region69: #{tpu_custom_call.1} parent=67 // pred_check
          %p2490 = pneg %p226
        $region70: #{tpu_custom_call.1} parent=67 // pred_check_branch
          %2492 = sbr.rel (%p2490) target = $region72
        $region71: #{tpu_custom_call.1} parent=67 // pred_region
          %s2493 = sand.u32 %s211, 1
          %s2494 = scalar_lea.sflag [#allocation4], %s2493
          %s2495 = sand.u32 %s211, 1
          %s2496 = smul.addr %s2495, 64
          %s2497 = scalar_lea.vmem [#allocation7], %s2496
          %2498 = dma.done %s2494, 1024
        $region72: #{tpu_custom_call.1} parent=67 // pred_fallthru
          _
      $region68: #{tpu_custom_call.1} parent=5 // pred_fallthru
        _
    $region6: #{tpu_custom_call.1} parent=1 // loop_footer
      %s23 = sadd.s32 1, %s19
    $region7: #{tpu_custom_call.1} parent=1 // loop_footer_branch
      %18 = sbr.rel target = $region3
    $region8: #{tpu_custom_call.1} parent=1 // loop_exit
      _
    %2499 = vsyncpa [#allocation3], 1
    %s2500 = scalar_lea.sflag [#allocation3], 1
    %2501 = vsyncpa %s2500, 1
    %2502 = vsyncpa [#allocation6], 1
    %2503 = vsyncpa [#allocation4], 1
    %s2504 = scalar_lea.sflag [#allocation4], 1
    %2505 = vsyncpa %s2504, 1

</llo_original>
